<compile_context>
chip_gen: v7x
topology: tpu7x:2x2x1
jax: 0.10.0
libtpu: 0.0.40
codegen_flags: <defaults>
</compile_context>

<pallas_src>
from math import floor

import numpy as np
import jax
import jax.numpy as jnp
from jax.experimental import pallas as pl
from jax.experimental.pallas import tpu as pltpu

# ----------------------------------------------------------------------------
# Small hyperparameters consistent with the PyTorch module
# ----------------------------------------------------------------------------
BATCH = 2
SEQ_LEN = 16
IN_CHANNELS = 4
NUM_CLASSES = 6
FILTERS = 16
KERNEL_SIZE = 3
DILATION_RATE = 2          # integer so Conv1d-style dilation stays integral
BOTTLENECK_FACTOR = 0.5
NUM_RES_BLOCKS = 2
BOTTLENECK = floor(BOTTLENECK_FACTOR * FILTERS)
BN_EPS = 1e-5
N_ROWS = BATCH * SEQ_LEN   # fused (B*L) slab height


def _block_dilation(i: int) -> int:
    # ResidualBlock: updated_dilation = max(1, dilation_rate * num_layer)
    return int(max(1, DILATION_RATE * i))


# ----------------------------------------------------------------------------
# Packed-parameter layout (one DMA instead of ~22): all params live in a single
# (PACK_ROWS, PCOLS) f32 buffer; every sub-array starts at an 8-aligned row.
# Order matches init_params().
# ----------------------------------------------------------------------------
PCOLS = 16  # max(FILTERS, BOTTLENECK, NUM_CLASSES, IN_CHANNELS)


def _param_shapes():
    shapes = [(KERNEL_SIZE * IN_CHANNELS, FILTERS),   # initial conv W (K*Cin, F)
              (1, FILTERS)]                           # initial conv bias
    for _ in range(NUM_RES_BLOCKS):
        shapes += [(1, FILTERS),                      # bn1 gamma
                   (1, FILTERS),                      # bn1 beta
                   (KERNEL_SIZE * FILTERS, BOTTLENECK),  # dilated conv W (K*F, Bot)
                   (1, BOTTLENECK),                   # dilated conv bias
                   (1, BOTTLENECK),                   # bn2 gamma
                   (1, BOTTLENECK),                   # bn2 beta
                   (BOTTLENECK, FILTERS),             # 1x1 channels conv W
                   (1, FILTERS)]                      # 1x1 channels conv bias
    shapes += [(FILTERS, NUM_CLASSES),                # linear W
               (1, NUM_CLASSES)]                      # linear bias
    return shapes


_PSHAPES = _param_shapes()
_POFFSETS = []
_off = 0
for _r, _c in _PSHAPES:
    _POFFSETS.append(_off)
    _off += ((_r + 7) // 8) * 8        # keep every param 8-row (sublane) aligned
PACK_ROWS = ((_off + 7) // 8) * 8


def pack_params(params):
    """Pack the raw parameter list into one (PACK_ROWS, PCOLS) f32 buffer."""
    buf = np.zeros((PACK_ROWS, PCOLS), np.float32)
    for i, p in enumerate(params):
        a = np.asarray(p, np.float32)
        if a.ndim == 3:                 # (K, Cin, Cout) -> (K*Cin, Cout), tap-major rows
            a = a.reshape(a.shape[0] * a.shape[1], a.shape[2])
        r0 = _POFFSETS[i]
        buf[r0:r0 + a.shape[0], :a.shape[1]] = a
    return jnp.asarray(buf)


# ----------------------------------------------------------------------------
# In-kernel building blocks (all operate on the fused (B*L, C) slab, register-resident)
# ----------------------------------------------------------------------------
def _bn_relu(x, gamma, beta):
    """Training-mode BatchNorm1d (biased stats over all B*L rows) fused with ReLU."""
    inv_n = 1.0 / x.shape[0]
    mean = jnp.sum(x, axis=0, keepdims=True) * inv_n
    d = x - mean
    var = jnp.sum(d * d, axis=0, keepdims=True) * inv_n
    return jnp.maximum(d * (jax.lax.rsqrt(var + BN_EPS) * gamma) + beta, 0.0)


def _dilated_conv(xm, taps, bias, dilation, t_idx):
    """'same' 1D cross-correlation over each sample of the (B*L, Cin) slab.

    taps: list of K (Cin, Cout) weights; bias: (1, Cout).
    Padding/windows are built as values (no scratch): zero-concat along sublanes,
    static shifted slices, and a per-tap mask that zeroes rows whose window would
    cross a sample boundary (this also re-applies the zero 'same' padding).
    """
    k_size = len(taps)
    total = dilation * (k_size - 1)
    left = total // 2                      # PyTorch 'same' left padding
    n, c = xm.shape

    parts = []
    if left:
        parts.append(jnp.zeros((left, c), xm.dtype))
    parts.append(xm)
    if total - left:
        parts.append(jnp.zeros((total - left, c), xm.dtype))
    padded = jnp.concatenate(parts, axis=0) if len(parts) > 1 else xm   # (n+total, c)

    acc = None
    for k in range(k_size):
        off = k * dilation - left
        win = padded[k * dilation:k * dilation + n, :]                  # (n, c)
        if off != 0:
            pos = t_idx + off                                           # (n, 1) int32
            valid = jnp.logical_and(pos >= 0, pos < SEQ_LEN)
            win = jnp.where(valid, win, 0.0)
        part = jnp.dot(win, taps[k], preferred_element_type=jnp.float32)
        acc = part if acc is None else acc + part
    return acc + bias


def _custom_conv(x, m_in, m_out, taps, bias, dilation, t_idx):
    """CustomConv.forward: mask -> conv -> mask, on the whole (B*L, C) slab."""
    xm = x * m_in
    if len(taps) == 1:     # 1x1 conv special case: no padding / windows at all
        y = jnp.dot(xm, taps[0], preferred_element_type=jnp.float32) + bias
    else:
        y = _dilated_conv(xm, taps, bias, dilation, t_idx)
    return y * m_out


# ----------------------------------------------------------------------------
# Fused kernel: initial conv -> residual blocks -> max-pool -> linear -> softmax
# ----------------------------------------------------------------------------
def protcnn_kernel(x_ref, m_ref, p_ref, out_ref):
    # x_ref: (B*L, Cin)   m_ref: (B*L, FILTERS) pre-broadcast mask
    # p_ref: (PACK_ROWS, PCOLS) packed parameters   out_ref: (B, NUM_CLASSES)
    t_idx = jax.lax.broadcasted_iota(jnp.int32, (N_ROWS, 1), 0) % SEQ_LEN

    m_full = m_ref[...]                       # (N, FILTERS)
    m_in = m_full[:, :IN_CHANNELS]
    m_bot = m_full[:, :BOTTLENECK]

    def getp(idx):
        r0 = _POFFSETS[idx]
        rows, cols = _PSHAPES[idx]
        return p_ref[r0:r0 + rows, :cols]

    def get_taps(idx, cin):
        cols = _PSHAPES[idx][1]
        base = _POFFSETS[idx]
        return [p_ref[base + k * cin:base + (k + 1) * cin, :cols]
                for k in range(KERNEL_SIZE)]

    x = x_ref[...]                            # (N, Cin)

    # initial CustomConv (K=3, dilation = 1)
    feats = _custom_conv(x, m_in, m_full, get_taps(0, IN_CHANNELS), getp(1), 1, t_idx)

    # residual blocks
    pidx = 2
    for i in range(NUM_RES_BLOCKS):
        dil = _block_dilation(i)
        g1, bt1 = getp(pidx), getp(pidx + 1)
        wd_taps = get_taps(pidx + 2, FILTERS)
        bd = getp(pidx + 3)
        g2, bt2 = getp(pidx + 4), getp(pidx + 5)
        wc, bc = getp(pidx + 6), getp(pidx + 7)

        h = _bn_relu(feats, g1, bt1)
        h = _custom_conv(h, m_full, m_bot, wd_taps, bd, dil, t_idx)
        h = _bn_relu(h, g2, bt2)
        res = _custom_conv(h, m_bot, m_full, [wc], bc, 1, t_idx)
        feats = feats + res
        pidx += 8

    # head: per-sample max over length -> single linear matmul -> softmax -> one store
    wl, bl = getp(pidx), getp(pidx + 1)
    pooled = jnp.concatenate(
        [jnp.max(feats[b * SEQ_LEN:(b + 1) * SEQ_LEN, :], axis=0, keepdims=True)
         for b in range(BATCH)],
        axis=0)                                                        # (B, FILTERS)
    logits = jnp.dot(pooled, wl, preferred_element_type=jnp.float32) + bl
    mx = jnp.max(logits, axis=-1, keepdims=True)
    e = jnp.exp(logits - mx)
    probs = e * (1.0 / jnp.sum(e, axis=-1, keepdims=True))
    out_ref[...] = probs.astype(out_ref.dtype)


# ----------------------------------------------------------------------------
# Wrapper + deterministic parameter init (plain-JAX glue)
# ----------------------------------------------------------------------------
def init_params(key):
    params = []

    def rand(shape, scale=0.1, shift=0.0):
        nonlocal key
        key, sub = jax.random.split(key)
        return (shift + scale * jax.random.normal(sub, shape)).astype(jnp.float32)

    params.append(rand((KERNEL_SIZE, IN_CHANNELS, FILTERS)))     # initial conv W (K, Cin, Cout)
    params.append(rand((1, FILTERS)))                            # initial conv bias
    for _ in range(NUM_RES_BLOCKS):
        params.append(rand((1, FILTERS), shift=1.0))             # bn1 gamma
        params.append(rand((1, FILTERS)))                        # bn1 beta
        params.append(rand((KERNEL_SIZE, FILTERS, BOTTLENECK)))  # dilated conv W
        params.append(rand((1, BOTTLENECK)))                     # dilated conv bias
        params.append(rand((1, BOTTLENECK), shift=1.0))          # bn2 gamma
        params.append(rand((1, BOTTLENECK)))                     # bn2 beta
        params.append(rand((1, BOTTLENECK, FILTERS)))            # 1x1 channels conv W
        params.append(rand((1, FILTERS)))                        # 1x1 channels conv bias
    params.append(rand((FILTERS, NUM_CLASSES)))                  # linear W (in, out)
    params.append(rand((1, NUM_CLASSES)))                        # linear bias
    return params


@jax.jit
def protcnn_forward(x_ncl, masks_ncl, packed_params):
    # layout: inputs arrive PyTorch-style NCL; go channels-last and fuse (B, L) -> B*L rows.
    x = jnp.transpose(x_ncl, (0, 2, 1)).astype(jnp.float32).reshape(N_ROWS, IN_CHANNELS)
    m = jnp.transpose(masks_ncl, (0, 2, 1)).astype(jnp.float32).reshape(N_ROWS, 1)
    m = jnp.broadcast_to(m, (N_ROWS, FILTERS))       # hoist lane-broadcast out of the kernel
    return pl.pallas_call(
        protcnn_kernel,
        out_shape=jax.ShapeDtypeStruct((BATCH, NUM_CLASSES), jnp.float32),
        in_specs=[pl.BlockSpec(memory_space=pltpu.MemorySpace.VMEM)] * 3,
        out_specs=pl.BlockSpec(memory_space=pltpu.MemorySpace.VMEM),
    )(x, m, packed_params)


# ----------------------------------------------------------------------------
# Pure-JAX reference (same math, channels-last) for correctness check
# ----------------------------------------------------------------------------
def _ref_conv_same(x, w, b, dilation):
    ksz = w.shape[0]
    total = dilation * (ksz - 1)
    left = total // 2
    xp = jnp.pad(x, ((0, 0), (left, total - left), (0, 0)))
    out = jnp.broadcast_to(b, (x.shape[0], x.shape[1], w.shape[2])).astype(jnp.float32)
    for k in range(ksz):
        win = xp[:, k * dilation:k * dilation + x.shape[1], :]
        out = out + jnp.einsum('blc,co->blo', win, w[k])
    return out


def _ref_custom_conv(x, m, w, b, dilation):
    xm = x * m
    return _ref_conv_same(xm, w, b, dilation) * m


def _ref_bn_train(x, gamma, beta):
    mean = jnp.mean(x, axis=(0, 1), keepdims=True)
    var = jnp.mean((x - mean) ** 2, axis=(0, 1), keepdims=True)
    return (x - mean) * jax.lax.rsqrt(var + BN_EPS) * gamma + beta


def protcnn_reference(x_ncl, masks_ncl, params):
    x = jnp.transpose(x_ncl, (0, 2, 1)).astype(jnp.float32)
    m = jnp.transpose(masks_ncl, (0, 2, 1)).astype(jnp.float32)
    feats = _ref_custom_conv(x, m, params[0], params[1], 1)
    off = 2
    for i in range(NUM_RES_BLOCKS):
        g1, bt1, wd, bd, g2, bt2, wc, bc = params[off:off + 8]
        off += 8
        h = jax.nn.relu(_ref_bn_train(feats, g1, bt1))
        h = _ref_custom_conv(h, m, wd, bd, _block_dilation(i))
        h = jax.nn.relu(_ref_bn_train(h, g2, bt2))
        res = _ref_custom_conv(h, m, wc, bc, 1)
        feats = res + feats
    wl, bl = params[off], params[off + 1]
    f = jnp.max(feats, axis=1)
    logits = f @ wl + bl
    return jax.nn.softmax(logits, axis=-1)


if __name__ == "__main__":
    key = jax.random.PRNGKey(0)
    k_x, k_p = jax.random.split(key)

    x = jax.random.normal(k_x, (BATCH, IN_CHANNELS, SEQ_LEN), dtype=jnp.float32)
    lengths = [SEQ_LEN, SEQ_LEN - 6]
    masks = jnp.stack(
        [(jnp.arange(SEQ_LEN) < lengths[b]).astype(jnp.float32)[None, :] for b in range(BATCH)],
        axis=0,
    )  # (B, 1, L)
    params = init_params(k_p)
    packed = pack_params(params)

    probs = protcnn_forward(x, masks, packed)
    probs = jax.block_until_ready(probs)

    ref = protcnn_reference(x, masks, params)
    assert probs.shape == (BATCH, NUM_CLASSES)
    np.testing.assert_allclose(np.asarray(probs), np.asarray(ref), atol=1e-4, rtol=1e-3)
    assert np.allclose(np.asarray(probs).sum(axis=-1), 1.0, atol=1e-4)
    print("KERNEL_OK")
</pallas_src>

<mosaic_0001>
module attributes {stable_mosaic.version = 11 : i64} {
  func.func @protcnn_kernel(%arg0: memref<32x4xf32, #tpu.memory_space<vmem>>, %arg1: memref<32x16xf32, #tpu.memory_space<vmem>>, %arg2: memref<256x16xf32, #tpu.memory_space<vmem>>, %arg3: memref<2x6xf32, #tpu.memory_space<vmem>>) attributes {dimension_semantics = [], scalar_prefetch = 0 : i64, scratch_operands = 0 : i64, tpu.core_type = #tpu.core_type<tc>} {
    %0 = tpu.iota {dimensions = array<i32: 0>} : vector<32x1xi32>
    %c16_i32 = arith.constant 16 : i32
    %c0_i32 = arith.constant 0 : i32
    %1 = arith.cmpi eq, %c16_i32, %c0_i32 : i32
    %c1_i32 = arith.constant 1 : i32
    %2 = arith.select %1, %c1_i32, %c16_i32 : i32
    %3 = vector.broadcast %2 : i32 to vector<32x1xi32>
    %4 = arith.remsi %0, %3 : vector<32x1xi32>
    %c0_i32_0 = arith.constant 0 : i32
    %5 = vector.broadcast %c0_i32_0 : i32 to vector<32x1xi32>
    %6 = arith.cmpi ne, %4, %5 : vector<32x1xi32>
    %c0_i32_1 = arith.constant 0 : i32
    %7 = vector.broadcast %c0_i32_1 : i32 to vector<32x1xi32>
    %8 = arith.cmpi slt, %4, %7 : vector<32x1xi32>
    %c0_i32_2 = arith.constant 0 : i32
    %9 = arith.cmpi slt, %2, %c0_i32_2 : i32
    %10 = vector.broadcast %9 : i1 to vector<32x1xi1>
    %11 = vector.broadcast %10 : vector<32x1xi1> to vector<32x1xi1>
    %12 = arith.xori %8, %11 : vector<32x1xi1>
    %13 = arith.andi %12, %6 : vector<32x1xi1>
    %14 = vector.broadcast %2 : i32 to vector<32x1xi32>
    %15 = arith.addi %4, %14 : vector<32x1xi32>
    %16 = arith.select %13, %15, %4 : vector<32x1xi1>, vector<32x1xi32>
    %c0 = arith.constant 0 : index
    %c0_3 = arith.constant 0 : index
    %17 = vector.load %arg1[%c0, %c0_3] : memref<32x16xf32, #tpu.memory_space<vmem>>, vector<32x16xf32>
    %18 = vector.extract_strided_slice %17 {offsets = [0, 0], sizes = [32, 4], strides = [1, 1]} : vector<32x16xf32> to vector<32x4xf32>
    %19 = vector.extract_strided_slice %17 {offsets = [0, 0], sizes = [32, 8], strides = [1, 1]} : vector<32x16xf32> to vector<32x8xf32>
    %c0_4 = arith.constant 0 : index
    %c0_5 = arith.constant 0 : index
    %20 = vector.load %arg0[%c0_4, %c0_5] : memref<32x4xf32, #tpu.memory_space<vmem>>, vector<32x4xf32>
    %c0_6 = arith.constant 0 : index
    %c0_7 = arith.constant 0 : index
    %21 = vector.load %arg2[%c0_6, %c0_7] : memref<256x16xf32, #tpu.memory_space<vmem>>, vector<4x16xf32>
    %c4 = arith.constant 4 : index
    %c0_8 = arith.constant 0 : index
    %22 = vector.load %arg2[%c4, %c0_8] : memref<256x16xf32, #tpu.memory_space<vmem>>, vector<4x16xf32>
    %c8 = arith.constant 8 : index
    %c0_9 = arith.constant 0 : index
    %23 = vector.load %arg2[%c8, %c0_9] : memref<256x16xf32, #tpu.memory_space<vmem>>, vector<4x16xf32>
    %c16 = arith.constant 16 : index
    %c0_10 = arith.constant 0 : index
    %24 = vector.load %arg2[%c16, %c0_10] : memref<256x16xf32, #tpu.memory_space<vmem>>, vector<1x16xf32>
    %25 = arith.mulf %20, %18 : vector<32x4xf32>
    %cst = arith.constant 0.000000e+00 : f32
    %26 = vector.broadcast %cst : f32 to vector<1x4xf32>
    %cst_11 = arith.constant 0.000000e+00 : f32
    %27 = vector.broadcast %cst_11 : f32 to vector<1x4xf32>
    %28 = tpu.concatenate %26, %25, %27 in 0 : vector<1x4xf32>, vector<32x4xf32>, vector<1x4xf32> -> vector<34x4xf32>
    %29 = vector.extract_strided_slice %28 {offsets = [0, 0], sizes = [32, 4], strides = [1, 1]} : vector<34x4xf32> to vector<32x4xf32>
    %c-1_i32 = arith.constant -1 : i32
    %30 = vector.broadcast %c-1_i32 : i32 to vector<32x1xi32>
    %31 = arith.addi %16, %30 : vector<32x1xi32>
    %c0_i32_12 = arith.constant 0 : i32
    %32 = vector.broadcast %c0_i32_12 : i32 to vector<32x1xi32>
    %33 = arith.cmpi sge, %31, %32 : vector<32x1xi32>
    %c16_i32_13 = arith.constant 16 : i32
    %34 = vector.broadcast %c16_i32_13 : i32 to vector<32x1xi32>
    %35 = arith.cmpi slt, %31, %34 : vector<32x1xi32>
    %36 = arith.andi %33, %35 : vector<32x1xi1>
    %cst_14 = arith.constant 0.000000e+00 : f32
    %37 = vector.shape_cast %36 : vector<32x1xi1> to vector<32x1xi1>
    %38 = vector.broadcast %37 : vector<32x1xi1> to vector<32x4xi1>
    %39 = vector.broadcast %cst_14 : f32 to vector<32x4xf32>
    %40 = arith.select %38, %29, %39 : vector<32x4xi1>, vector<32x4xf32>
    %cst_15 = arith.constant dense<0.000000e+00> : vector<32x16xf32>
    %41 = tpu.matmul %40, %21, %cst_15 {dimension_numbers = #tpu.dot_dimension_numbers<[1], [0], [0], [1], [0, 0, 1, 1], [], []>} : vector<32x4xf32>, vector<4x16xf32>, vector<32x16xf32> -> vector<32x16xf32>
    %42 = vector.extract_strided_slice %28 {offsets = [1, 0], sizes = [32, 4], strides = [1, 1]} : vector<34x4xf32> to vector<32x4xf32>
    %cst_16 = arith.constant dense<0.000000e+00> : vector<32x16xf32>
    %43 = tpu.matmul %42, %22, %cst_16 {dimension_numbers = #tpu.dot_dimension_numbers<[1], [0], [0], [1], [0, 0, 1, 1], [], []>} : vector<32x4xf32>, vector<4x16xf32>, vector<32x16xf32> -> vector<32x16xf32>
    %44 = arith.addf %41, %43 : vector<32x16xf32>
    %45 = vector.extract_strided_slice %28 {offsets = [2, 0], sizes = [32, 4], strides = [1, 1]} : vector<34x4xf32> to vector<32x4xf32>
    %c1_i32_17 = arith.constant 1 : i32
    %46 = vector.broadcast %c1_i32_17 : i32 to vector<32x1xi32>
    %47 = arith.addi %16, %46 : vector<32x1xi32>
    %c0_i32_18 = arith.constant 0 : i32
    %48 = vector.broadcast %c0_i32_18 : i32 to vector<32x1xi32>
    %49 = arith.cmpi sge, %47, %48 : vector<32x1xi32>
    %c16_i32_19 = arith.constant 16 : i32
    %50 = vector.broadcast %c16_i32_19 : i32 to vector<32x1xi32>
    %51 = arith.cmpi slt, %47, %50 : vector<32x1xi32>
    %52 = arith.andi %49, %51 : vector<32x1xi1>
    %cst_20 = arith.constant 0.000000e+00 : f32
    %53 = vector.shape_cast %52 : vector<32x1xi1> to vector<32x1xi1>
    %54 = vector.broadcast %53 : vector<32x1xi1> to vector<32x4xi1>
    %55 = vector.broadcast %cst_20 : f32 to vector<32x4xf32>
    %56 = arith.select %54, %45, %55 : vector<32x4xi1>, vector<32x4xf32>
    %cst_21 = arith.constant dense<0.000000e+00> : vector<32x16xf32>
    %57 = tpu.matmul %56, %23, %cst_21 {dimension_numbers = #tpu.dot_dimension_numbers<[1], [0], [0], [1], [0, 0, 1, 1], [], []>} : vector<32x4xf32>, vector<4x16xf32>, vector<32x16xf32> -> vector<32x16xf32>
    %58 = arith.addf %44, %57 : vector<32x16xf32>
    %59 = vector.broadcast %24 : vector<1x16xf32> to vector<32x16xf32>
    %60 = arith.addf %58, %59 : vector<32x16xf32>
    %61 = arith.mulf %60, %17 : vector<32x16xf32>
    %c24 = arith.constant 24 : index
    %c0_22 = arith.constant 0 : index
    %62 = vector.load %arg2[%c24, %c0_22] : memref<256x16xf32, #tpu.memory_space<vmem>>, vector<1x16xf32>
    %c32 = arith.constant 32 : index
    %c0_23 = arith.constant 0 : index
    %63 = vector.load %arg2[%c32, %c0_23] : memref<256x16xf32, #tpu.memory_space<vmem>>, vector<1x16xf32>
    %c40 = arith.constant 40 : index
    %c0_24 = arith.constant 0 : index
    %64 = vector.load %arg2[%c40, %c0_24] : memref<256x16xf32, #tpu.memory_space<vmem>>, vector<16x8xf32>
    %c56 = arith.constant 56 : index
    %c0_25 = arith.constant 0 : index
    %65 = vector.load %arg2[%c56, %c0_25] : memref<256x16xf32, #tpu.memory_space<vmem>>, vector<16x8xf32>
    %c72 = arith.constant 72 : index
    %c0_26 = arith.constant 0 : index
    %66 = vector.load %arg2[%c72, %c0_26] : memref<256x16xf32, #tpu.memory_space<vmem>>, vector<16x8xf32>
    %c88 = arith.constant 88 : index
    %c0_27 = arith.constant 0 : index
    %67 = vector.load %arg2[%c88, %c0_27] : memref<256x16xf32, #tpu.memory_space<vmem>>, vector<1x8xf32>
    %c96 = arith.constant 96 : index
    %c0_28 = arith.constant 0 : index
    %68 = vector.load %arg2[%c96, %c0_28] : memref<256x16xf32, #tpu.memory_space<vmem>>, vector<1x8xf32>
    %c104 = arith.constant 104 : index
    %c0_29 = arith.constant 0 : index
    %69 = vector.load %arg2[%c104, %c0_29] : memref<256x16xf32, #tpu.memory_space<vmem>>, vector<1x8xf32>
    %c112 = arith.constant 112 : index
    %c0_30 = arith.constant 0 : index
    %70 = vector.load %arg2[%c112, %c0_30] : memref<256x16xf32, #tpu.memory_space<vmem>>, vector<8x16xf32>
    %c120 = arith.constant 120 : index
    %c0_31 = arith.constant 0 : index
    %71 = vector.load %arg2[%c120, %c0_31] : memref<256x16xf32, #tpu.memory_space<vmem>>, vector<1x16xf32>
    %cst_32 = arith.constant dense<0.000000e+00> : vector<16xf32>
    %72 = vector.multi_reduction <add>, %61, %cst_32 [0] : vector<32x16xf32> to vector<16xf32>
    %73 = vector.shape_cast %72 : vector<16xf32> to vector<1x16xf32>
    %cst_33 = arith.constant 3.125000e-02 : f32
    %74 = vector.broadcast %cst_33 : f32 to vector<1x16xf32>
    %75 = arith.mulf %73, %74 : vector<1x16xf32>
    %76 = vector.broadcast %75 : vector<1x16xf32> to vector<32x16xf32>
    %77 = arith.subf %61, %76 : vector<32x16xf32>
    %78 = arith.mulf %77, %77 : vector<32x16xf32>
    %cst_34 = arith.constant dense<0.000000e+00> : vector<16xf32>
    %79 = vector.multi_reduction <add>, %78, %cst_34 [0] : vector<32x16xf32> to vector<16xf32>
    %80 = vector.shape_cast %79 : vector<16xf32> to vector<1x16xf32>
    %cst_35 = arith.constant 3.125000e-02 : f32
    %81 = vector.broadcast %cst_35 : f32 to vector<1x16xf32>
    %82 = arith.mulf %80, %81 : vector<1x16xf32>
    %cst_36 = arith.constant 9.99999974E-6 : f32
    %83 = vector.broadcast %cst_36 : f32 to vector<1x16xf32>
    %84 = arith.addf %82, %83 : vector<1x16xf32>
    %85 = math.rsqrt %84 : vector<1x16xf32>
    %86 = arith.mulf %85, %62 : vector<1x16xf32>
    %87 = vector.broadcast %86 : vector<1x16xf32> to vector<32x16xf32>
    %88 = arith.mulf %77, %87 : vector<32x16xf32>
    %89 = vector.broadcast %63 : vector<1x16xf32> to vector<32x16xf32>
    %90 = arith.addf %88, %89 : vector<32x16xf32>
    %cst_37 = arith.constant 0.000000e+00 : f32
    %91 = vector.broadcast %cst_37 : f32 to vector<32x16xf32>
    %92 = arith.maximumf %90, %91 : vector<32x16xf32>
    %93 = arith.mulf %92, %17 : vector<32x16xf32>
    %cst_38 = arith.constant 0.000000e+00 : f32
    %94 = vector.broadcast %cst_38 : f32 to vector<1x16xf32>
    %cst_39 = arith.constant 0.000000e+00 : f32
    %95 = vector.broadcast %cst_39 : f32 to vector<1x16xf32>
    %96 = tpu.concatenate %94, %93, %95 in 0 : vector<1x16xf32>, vector<32x16xf32>, vector<1x16xf32> -> vector<34x16xf32>
    %97 = vector.extract_strided_slice %96 {offsets = [0, 0], sizes = [32, 16], strides = [1, 1]} : vector<34x16xf32> to vector<32x16xf32>
    %c-1_i32_40 = arith.constant -1 : i32
    %98 = vector.broadcast %c-1_i32_40 : i32 to vector<32x1xi32>
    %99 = arith.addi %16, %98 : vector<32x1xi32>
    %c0_i32_41 = arith.constant 0 : i32
    %100 = vector.broadcast %c0_i32_41 : i32 to vector<32x1xi32>
    %101 = arith.cmpi sge, %99, %100 : vector<32x1xi32>
    %c16_i32_42 = arith.constant 16 : i32
    %102 = vector.broadcast %c16_i32_42 : i32 to vector<32x1xi32>
    %103 = arith.cmpi slt, %99, %102 : vector<32x1xi32>
    %104 = arith.andi %101, %103 : vector<32x1xi1>
    %cst_43 = arith.constant 0.000000e+00 : f32
    %105 = vector.shape_cast %104 : vector<32x1xi1> to vector<32x1xi1>
    %106 = vector.broadcast %105 : vector<32x1xi1> to vector<32x16xi1>
    %107 = vector.broadcast %cst_43 : f32 to vector<32x16xf32>
    %108 = arith.select %106, %97, %107 : vector<32x16xi1>, vector<32x16xf32>
    %cst_44 = arith.constant dense<0.000000e+00> : vector<32x8xf32>
    %109 = tpu.matmul %108, %64, %cst_44 {dimension_numbers = #tpu.dot_dimension_numbers<[1], [0], [0], [1], [0, 0, 1, 1], [], []>} : vector<32x16xf32>, vector<16x8xf32>, vector<32x8xf32> -> vector<32x8xf32>
    %110 = vector.extract_strided_slice %96 {offsets = [1, 0], sizes = [32, 16], strides = [1, 1]} : vector<34x16xf32> to vector<32x16xf32>
    %cst_45 = arith.constant dense<0.000000e+00> : vector<32x8xf32>
    %111 = tpu.matmul %110, %65, %cst_45 {dimension_numbers = #tpu.dot_dimension_numbers<[1], [0], [0], [1], [0, 0, 1, 1], [], []>} : vector<32x16xf32>, vector<16x8xf32>, vector<32x8xf32> -> vector<32x8xf32>
    %112 = arith.addf %109, %111 : vector<32x8xf32>
    %113 = vector.extract_strided_slice %96 {offsets = [2, 0], sizes = [32, 16], strides = [1, 1]} : vector<34x16xf32> to vector<32x16xf32>
    %c1_i32_46 = arith.constant 1 : i32
    %114 = vector.broadcast %c1_i32_46 : i32 to vector<32x1xi32>
    %115 = arith.addi %16, %114 : vector<32x1xi32>
    %c0_i32_47 = arith.constant 0 : i32
    %116 = vector.broadcast %c0_i32_47 : i32 to vector<32x1xi32>
    %117 = arith.cmpi sge, %115, %116 : vector<32x1xi32>
    %c16_i32_48 = arith.constant 16 : i32
    %118 = vector.broadcast %c16_i32_48 : i32 to vector<32x1xi32>
    %119 = arith.cmpi slt, %115, %118 : vector<32x1xi32>
    %120 = arith.andi %117, %119 : vector<32x1xi1>
    %cst_49 = arith.constant 0.000000e+00 : f32
    %121 = vector.shape_cast %120 : vector<32x1xi1> to vector<32x1xi1>
    %122 = vector.broadcast %121 : vector<32x1xi1> to vector<32x16xi1>
    %123 = vector.broadcast %cst_49 : f32 to vector<32x16xf32>
    %124 = arith.select %122, %113, %123 : vector<32x16xi1>, vector<32x16xf32>
    %cst_50 = arith.constant dense<0.000000e+00> : vector<32x8xf32>
    %125 = tpu.matmul %124, %66, %cst_50 {dimension_numbers = #tpu.dot_dimension_numbers<[1], [0], [0], [1], [0, 0, 1, 1], [], []>} : vector<32x16xf32>, vector<16x8xf32>, vector<32x8xf32> -> vector<32x8xf32>
    %126 = arith.addf %112, %125 : vector<32x8xf32>
    %127 = vector.broadcast %67 : vector<1x8xf32> to vector<32x8xf32>
    %128 = arith.addf %126, %127 : vector<32x8xf32>
    %129 = arith.mulf %128, %19 : vector<32x8xf32>
    %cst_51 = arith.constant dense<0.000000e+00> : vector<8xf32>
    %130 = vector.multi_reduction <add>, %129, %cst_51 [0] : vector<32x8xf32> to vector<8xf32>
    %131 = vector.shape_cast %130 : vector<8xf32> to vector<1x8xf32>
    %cst_52 = arith.constant 3.125000e-02 : f32
    %132 = vector.broadcast %cst_52 : f32 to vector<1x8xf32>
    %133 = arith.mulf %131, %132 : vector<1x8xf32>
    %134 = vector.broadcast %133 : vector<1x8xf32> to vector<32x8xf32>
    %135 = arith.subf %129, %134 : vector<32x8xf32>
    %136 = arith.mulf %135, %135 : vector<32x8xf32>
    %cst_53 = arith.constant dense<0.000000e+00> : vector<8xf32>
    %137 = vector.multi_reduction <add>, %136, %cst_53 [0] : vector<32x8xf32> to vector<8xf32>
    %138 = vector.shape_cast %137 : vector<8xf32> to vector<1x8xf32>
    %cst_54 = arith.constant 3.125000e-02 : f32
    %139 = vector.broadcast %cst_54 : f32 to vector<1x8xf32>
    %140 = arith.mulf %138, %139 : vector<1x8xf32>
    %cst_55 = arith.constant 9.99999974E-6 : f32
    %141 = vector.broadcast %cst_55 : f32 to vector<1x8xf32>
    %142 = arith.addf %140, %141 : vector<1x8xf32>
    %143 = math.rsqrt %142 : vector<1x8xf32>
    %144 = arith.mulf %143, %68 : vector<1x8xf32>
    %145 = vector.broadcast %144 : vector<1x8xf32> to vector<32x8xf32>
    %146 = arith.mulf %135, %145 : vector<32x8xf32>
    %147 = vector.broadcast %69 : vector<1x8xf32> to vector<32x8xf32>
    %148 = arith.addf %146, %147 : vector<32x8xf32>
    %cst_56 = arith.constant 0.000000e+00 : f32
    %149 = vector.broadcast %cst_56 : f32 to vector<32x8xf32>
    %150 = arith.maximumf %148, %149 : vector<32x8xf32>
    %151 = arith.mulf %150, %19 : vector<32x8xf32>
    %cst_57 = arith.constant dense<0.000000e+00> : vector<32x16xf32>
    %152 = tpu.matmul %151, %70, %cst_57 {dimension_numbers = #tpu.dot_dimension_numbers<[1], [0], [0], [1], [0, 0, 1, 1], [], []>} : vector<32x8xf32>, vector<8x16xf32>, vector<32x16xf32> -> vector<32x16xf32>
    %153 = vector.broadcast %71 : vector<1x16xf32> to vector<32x16xf32>
    %154 = arith.addf %152, %153 : vector<32x16xf32>
    %155 = arith.mulf %154, %17 : vector<32x16xf32>
    %156 = arith.addf %61, %155 : vector<32x16xf32>
    %c128 = arith.constant 128 : index
    %c0_58 = arith.constant 0 : index
    %157 = vector.load %arg2[%c128, %c0_58] : memref<256x16xf32, #tpu.memory_space<vmem>>, vector<1x16xf32>
    %c136 = arith.constant 136 : index
    %c0_59 = arith.constant 0 : index
    %158 = vector.load %arg2[%c136, %c0_59] : memref<256x16xf32, #tpu.memory_space<vmem>>, vector<1x16xf32>
    %c144 = arith.constant 144 : index
    %c0_60 = arith.constant 0 : index
    %159 = vector.load %arg2[%c144, %c0_60] : memref<256x16xf32, #tpu.memory_space<vmem>>, vector<16x8xf32>
    %c160 = arith.constant 160 : index
    %c0_61 = arith.constant 0 : index
    %160 = vector.load %arg2[%c160, %c0_61] : memref<256x16xf32, #tpu.memory_space<vmem>>, vector<16x8xf32>
    %c176 = arith.constant 176 : index
    %c0_62 = arith.constant 0 : index
    %161 = vector.load %arg2[%c176, %c0_62] : memref<256x16xf32, #tpu.memory_space<vmem>>, vector<16x8xf32>
    %c192 = arith.constant 192 : index
    %c0_63 = arith.constant 0 : index
    %162 = vector.load %arg2[%c192, %c0_63] : memref<256x16xf32, #tpu.memory_space<vmem>>, vector<1x8xf32>
    %c200 = arith.constant 200 : index
    %c0_64 = arith.constant 0 : index
    %163 = vector.load %arg2[%c200, %c0_64] : memref<256x16xf32, #tpu.memory_space<vmem>>, vector<1x8xf32>
    %c208 = arith.constant 208 : index
    %c0_65 = arith.constant 0 : index
    %164 = vector.load %arg2[%c208, %c0_65] : memref<256x16xf32, #tpu.memory_space<vmem>>, vector<1x8xf32>
    %c216 = arith.constant 216 : index
    %c0_66 = arith.constant 0 : index
    %165 = vector.load %arg2[%c216, %c0_66] : memref<256x16xf32, #tpu.memory_space<vmem>>, vector<8x16xf32>
    %c224 = arith.constant 224 : index
    %c0_67 = arith.constant 0 : index
    %166 = vector.load %arg2[%c224, %c0_67] : memref<256x16xf32, #tpu.memory_space<vmem>>, vector<1x16xf32>
    %cst_68 = arith.constant dense<0.000000e+00> : vector<16xf32>
    %167 = vector.multi_reduction <add>, %156, %cst_68 [0] : vector<32x16xf32> to vector<16xf32>
    %168 = vector.shape_cast %167 : vector<16xf32> to vector<1x16xf32>
    %cst_69 = arith.constant 3.125000e-02 : f32
    %169 = vector.broadcast %cst_69 : f32 to vector<1x16xf32>
    %170 = arith.mulf %168, %169 : vector<1x16xf32>
    %171 = vector.broadcast %170 : vector<1x16xf32> to vector<32x16xf32>
    %172 = arith.subf %156, %171 : vector<32x16xf32>
    %173 = arith.mulf %172, %172 : vector<32x16xf32>
    %cst_70 = arith.constant dense<0.000000e+00> : vector<16xf32>
    %174 = vector.multi_reduction <add>, %173, %cst_70 [0] : vector<32x16xf32> to vector<16xf32>
    %175 = vector.shape_cast %174 : vector<16xf32> to vector<1x16xf32>
    %cst_71 = arith.constant 3.125000e-02 : f32
    %176 = vector.broadcast %cst_71 : f32 to vector<1x16xf32>
    %177 = arith.mulf %175, %176 : vector<1x16xf32>
    %cst_72 = arith.constant 9.99999974E-6 : f32
    %178 = vector.broadcast %cst_72 : f32 to vector<1x16xf32>
    %179 = arith.addf %177, %178 : vector<1x16xf32>
    %180 = math.rsqrt %179 : vector<1x16xf32>
    %181 = arith.mulf %180, %157 : vector<1x16xf32>
    %182 = vector.broadcast %181 : vector<1x16xf32> to vector<32x16xf32>
    %183 = arith.mulf %172, %182 : vector<32x16xf32>
    %184 = vector.broadcast %158 : vector<1x16xf32> to vector<32x16xf32>
    %185 = arith.addf %183, %184 : vector<32x16xf32>
    %cst_73 = arith.constant 0.000000e+00 : f32
    %186 = vector.broadcast %cst_73 : f32 to vector<32x16xf32>
    %187 = arith.maximumf %185, %186 : vector<32x16xf32>
    %188 = arith.mulf %187, %17 : vector<32x16xf32>
    %cst_74 = arith.constant 0.000000e+00 : f32
    %189 = vector.broadcast %cst_74 : f32 to vector<2x16xf32>
    %cst_75 = arith.constant 0.000000e+00 : f32
    %190 = vector.broadcast %cst_75 : f32 to vector<2x16xf32>
    %191 = tpu.concatenate %189, %188, %190 in 0 : vector<2x16xf32>, vector<32x16xf32>, vector<2x16xf32> -> vector<36x16xf32>
    %192 = vector.extract_strided_slice %191 {offsets = [0, 0], sizes = [32, 16], strides = [1, 1]} : vector<36x16xf32> to vector<32x16xf32>
    %c-2_i32 = arith.constant -2 : i32
    %193 = vector.broadcast %c-2_i32 : i32 to vector<32x1xi32>
    %194 = arith.addi %16, %193 : vector<32x1xi32>
    %c0_i32_76 = arith.constant 0 : i32
    %195 = vector.broadcast %c0_i32_76 : i32 to vector<32x1xi32>
    %196 = arith.cmpi sge, %194, %195 : vector<32x1xi32>
    %c16_i32_77 = arith.constant 16 : i32
    %197 = vector.broadcast %c16_i32_77 : i32 to vector<32x1xi32>
    %198 = arith.cmpi slt, %194, %197 : vector<32x1xi32>
    %199 = arith.andi %196, %198 : vector<32x1xi1>
    %cst_78 = arith.constant 0.000000e+00 : f32
    %200 = vector.shape_cast %199 : vector<32x1xi1> to vector<32x1xi1>
    %201 = vector.broadcast %200 : vector<32x1xi1> to vector<32x16xi1>
    %202 = vector.broadcast %cst_78 : f32 to vector<32x16xf32>
    %203 = arith.select %201, %192, %202 : vector<32x16xi1>, vector<32x16xf32>
    %cst_79 = arith.constant dense<0.000000e+00> : vector<32x8xf32>
    %204 = tpu.matmul %203, %159, %cst_79 {dimension_numbers = #tpu.dot_dimension_numbers<[1], [0], [0], [1], [0, 0, 1, 1], [], []>} : vector<32x16xf32>, vector<16x8xf32>, vector<32x8xf32> -> vector<32x8xf32>
    %205 = vector.extract_strided_slice %191 {offsets = [2, 0], sizes = [32, 16], strides = [1, 1]} : vector<36x16xf32> to vector<32x16xf32>
    %cst_80 = arith.constant dense<0.000000e+00> : vector<32x8xf32>
    %206 = tpu.matmul %205, %160, %cst_80 {dimension_numbers = #tpu.dot_dimension_numbers<[1], [0], [0], [1], [0, 0, 1, 1], [], []>} : vector<32x16xf32>, vector<16x8xf32>, vector<32x8xf32> -> vector<32x8xf32>
    %207 = arith.addf %204, %206 : vector<32x8xf32>
    %208 = vector.extract_strided_slice %191 {offsets = [4, 0], sizes = [32, 16], strides = [1, 1]} : vector<36x16xf32> to vector<32x16xf32>
    %c2_i32 = arith.constant 2 : i32
    %209 = vector.broadcast %c2_i32 : i32 to vector<32x1xi32>
    %210 = arith.addi %16, %209 : vector<32x1xi32>
    %c0_i32_81 = arith.constant 0 : i32
    %211 = vector.broadcast %c0_i32_81 : i32 to vector<32x1xi32>
    %212 = arith.cmpi sge, %210, %211 : vector<32x1xi32>
    %c16_i32_82 = arith.constant 16 : i32
    %213 = vector.broadcast %c16_i32_82 : i32 to vector<32x1xi32>
    %214 = arith.cmpi slt, %210, %213 : vector<32x1xi32>
    %215 = arith.andi %212, %214 : vector<32x1xi1>
    %cst_83 = arith.constant 0.000000e+00 : f32
    %216 = vector.shape_cast %215 : vector<32x1xi1> to vector<32x1xi1>
    %217 = vector.broadcast %216 : vector<32x1xi1> to vector<32x16xi1>
    %218 = vector.broadcast %cst_83 : f32 to vector<32x16xf32>
    %219 = arith.select %217, %208, %218 : vector<32x16xi1>, vector<32x16xf32>
    %cst_84 = arith.constant dense<0.000000e+00> : vector<32x8xf32>
    %220 = tpu.matmul %219, %161, %cst_84 {dimension_numbers = #tpu.dot_dimension_numbers<[1], [0], [0], [1], [0, 0, 1, 1], [], []>} : vector<32x16xf32>, vector<16x8xf32>, vector<32x8xf32> -> vector<32x8xf32>
    %221 = arith.addf %207, %220 : vector<32x8xf32>
    %222 = vector.broadcast %162 : vector<1x8xf32> to vector<32x8xf32>
    %223 = arith.addf %221, %222 : vector<32x8xf32>
    %224 = arith.mulf %223, %19 : vector<32x8xf32>
    %cst_85 = arith.constant dense<0.000000e+00> : vector<8xf32>
    %225 = vector.multi_reduction <add>, %224, %cst_85 [0] : vector<32x8xf32> to vector<8xf32>
    %226 = vector.shape_cast %225 : vector<8xf32> to vector<1x8xf32>
    %cst_86 = arith.constant 3.125000e-02 : f32
    %227 = vector.broadcast %cst_86 : f32 to vector<1x8xf32>
    %228 = arith.mulf %226, %227 : vector<1x8xf32>
    %229 = vector.broadcast %228 : vector<1x8xf32> to vector<32x8xf32>
    %230 = arith.subf %224, %229 : vector<32x8xf32>
    %231 = arith.mulf %230, %230 : vector<32x8xf32>
    %cst_87 = arith.constant dense<0.000000e+00> : vector<8xf32>
    %232 = vector.multi_reduction <add>, %231, %cst_87 [0] : vector<32x8xf32> to vector<8xf32>
    %233 = vector.shape_cast %232 : vector<8xf32> to vector<1x8xf32>
    %cst_88 = arith.constant 3.125000e-02 : f32
    %234 = vector.broadcast %cst_88 : f32 to vector<1x8xf32>
    %235 = arith.mulf %233, %234 : vector<1x8xf32>
    %cst_89 = arith.constant 9.99999974E-6 : f32
    %236 = vector.broadcast %cst_89 : f32 to vector<1x8xf32>
    %237 = arith.addf %235, %236 : vector<1x8xf32>
    %238 = math.rsqrt %237 : vector<1x8xf32>
    %239 = arith.mulf %238, %163 : vector<1x8xf32>
    %240 = vector.broadcast %239 : vector<1x8xf32> to vector<32x8xf32>
    %241 = arith.mulf %230, %240 : vector<32x8xf32>
    %242 = vector.broadcast %164 : vector<1x8xf32> to vector<32x8xf32>
    %243 = arith.addf %241, %242 : vector<32x8xf32>
    %cst_90 = arith.constant 0.000000e+00 : f32
    %244 = vector.broadcast %cst_90 : f32 to vector<32x8xf32>
    %245 = arith.maximumf %243, %244 : vector<32x8xf32>
    %246 = arith.mulf %245, %19 : vector<32x8xf32>
    %cst_91 = arith.constant dense<0.000000e+00> : vector<32x16xf32>
    %247 = tpu.matmul %246, %165, %cst_91 {dimension_numbers = #tpu.dot_dimension_numbers<[1], [0], [0], [1], [0, 0, 1, 1], [], []>} : vector<32x8xf32>, vector<8x16xf32>, vector<32x16xf32> -> vector<32x16xf32>
    %248 = vector.broadcast %166 : vector<1x16xf32> to vector<32x16xf32>
    %249 = arith.addf %247, %248 : vector<32x16xf32>
    %250 = arith.mulf %249, %17 : vector<32x16xf32>
    %251 = arith.addf %156, %250 : vector<32x16xf32>
    %c232 = arith.constant 232 : index
    %c0_92 = arith.constant 0 : index
    %252 = vector.load %arg2[%c232, %c0_92] : memref<256x16xf32, #tpu.memory_space<vmem>>, vector<16x6xf32>
    %c248 = arith.constant 248 : index
    %c0_93 = arith.constant 0 : index
    %253 = vector.load %arg2[%c248, %c0_93] : memref<256x16xf32, #tpu.memory_space<vmem>>, vector<1x6xf32>
    %254 = vector.extract_strided_slice %251 {offsets = [0, 0], sizes = [16, 16], strides = [1, 1]} : vector<32x16xf32> to vector<16x16xf32>
    %cst_94 = arith.constant dense<0xFF800000> : vector<16xf32>
    %255 = vector.multi_reduction <maximumf>, %254, %cst_94 [0] : vector<16x16xf32> to vector<16xf32>
    %256 = vector.shape_cast %255 : vector<16xf32> to vector<1x16xf32>
    %257 = vector.extract_strided_slice %251 {offsets = [16, 0], sizes = [16, 16], strides = [1, 1]} : vector<32x16xf32> to vector<16x16xf32>
    %cst_95 = arith.constant dense<0xFF800000> : vector<16xf32>
    %258 = vector.multi_reduction <maximumf>, %257, %cst_95 [0] : vector<16x16xf32> to vector<16xf32>
    %259 = vector.shape_cast %258 : vector<16xf32> to vector<1x16xf32>
    %260 = tpu.concatenate %256, %259 in 0 : vector<1x16xf32>, vector<1x16xf32> -> vector<2x16xf32>
    %cst_96 = arith.constant dense<0.000000e+00> : vector<2x6xf32>
    %261 = tpu.matmul %260, %252, %cst_96 {dimension_numbers = #tpu.dot_dimension_numbers<[1], [0], [0], [1], [0, 0, 1, 1], [], []>} : vector<2x16xf32>, vector<16x6xf32>, vector<2x6xf32> -> vector<2x6xf32>
    %262 = vector.broadcast %253 : vector<1x6xf32> to vector<2x6xf32>
    %263 = arith.addf %261, %262 : vector<2x6xf32>
    %cst_97 = arith.constant dense<0xFF800000> : vector<2xf32>
    %264 = vector.multi_reduction <maximumf>, %263, %cst_97 [1] : vector<2x6xf32> to vector<2xf32>
    %265 = vector.shape_cast %264 : vector<2xf32> to vector<2x1xf32>
    %266 = vector.broadcast %265 : vector<2x1xf32> to vector<2x6xf32>
    %267 = arith.subf %263, %266 : vector<2x6xf32>
    %268 = math.exp %267 : vector<2x6xf32>
    %cst_98 = arith.constant dense<0.000000e+00> : vector<2xf32>
    %269 = vector.multi_reduction <add>, %268, %cst_98 [1] : vector<2x6xf32> to vector<2xf32>
    %270 = vector.shape_cast %269 : vector<2xf32> to vector<2x1xf32>
    %cst_99 = arith.constant 1.000000e+00 : f32
    %271 = vector.broadcast %cst_99 : f32 to vector<2x1xf32>
    %272 = arith.divf %271, %270 : vector<2x1xf32>
    %273 = vector.broadcast %272 : vector<2x1xf32> to vector<2x6xf32>
    %274 = arith.mulf %268, %273 : vector<2x6xf32>
    %c0_100 = arith.constant 0 : index
    %c0_101 = arith.constant 0 : index
    %275 = vector.load %arg3[%c0_100, %c0_101] : memref<2x6xf32, #tpu.memory_space<vmem>>, vector<2x6xf32>
    tpu.vector_store %arg3[%c0_100, %c0_101], %274 {strides = array<i32>} : memref<2x6xf32, #tpu.memory_space<vmem>>, vector<2x6xf32>,
    return
  }
}

</mosaic_0001>

<llo_original>
// kernel: protcnn_forward.1
$region0: #{protcnn_forward.1}
  #allocation0 [shape = 'u32[]', space=smem, size = 0x4, offset = 0x4, fixed_abs, tag = 'smem constant byte address 0x4 - core index']
  #allocation1 [shape = 'u32[144,128]{1,0:T(1,128)}', space=vmem, size = 0x12000, scoped, tag = 'internal scratch']
  %s0 = inlined_call_operand.vmem [shape: f32[32,4], index: 0, kind: input, shape index: {}]
  %s1 = inlined_call_operand.vmem [shape: f32[32,16], index: 1, kind: input, shape index: {}]
  %s2 = inlined_call_operand.vmem [shape: f32[256,16], index: 2, kind: input, shape index: {}]
  %s3 = inlined_call_operand.hbm [shape: f32[2,6], index: 3, kind: output, shape index: {}]
  %s4 = sld [smem:[#allocation0]]
  $region22: #{protcnn_forward.1} parent=0
    _
  %s6 = ssub.s32 1, %s4
  %s7 = scalar_select 0, %s6, %s4
  $region1: #{protcnn_forward.1} parent=0
    #allocation2 [shape = 'u8[1024]{0}', space=vmem, size = 0x400, scoped, tag = 'output window, operand 0, single buffered']
    #allocation3 [shape = 's32[1]{0}', space=sflag, size = 0x4, scoped, tag = 'scoped memory for protcnn_forward.1']
    %8 = vsyncpa [#allocation3], 0
    // Predicated region
    $region2: #{protcnn_forward.1} parent=1 // pred_check
      _
    $region3: #{protcnn_forward.1} parent=1 // pred_check_branch
      %10 = sbr.rel (0) target = $region5
    $region4: #{protcnn_forward.1} parent=1 // pred_region
      _
    $region5: #{protcnn_forward.1} parent=1 // pred_fallthru
      _
    // Predicated region
    $region6: #{protcnn_forward.1} parent=1 // pred_check
      _
    $region7: #{protcnn_forward.1} parent=1 // pred_check_branch
      %12 = sbr.rel (0) target = $region9
    $region8: #{protcnn_forward.1} parent=1 // pred_region
      _
    $region9: #{protcnn_forward.1} parent=1 // pred_fallthru
      _
    // Predicated region
    $region10: #{protcnn_forward.1} parent=1 // pred_check
      _
    $region11: #{protcnn_forward.1} parent=1 // pred_check_branch
      %14 = sbr.rel (0) target = $region13
    $region12: #{protcnn_forward.1} parent=1 // pred_region
      _
    $region13: #{protcnn_forward.1} parent=1 // pred_fallthru
      _
    %v15 = vlaneseq
    %v16 = vshrl.u32 %v15, 7
    %v17 = vadd.s32 %v16, 8
    %v18 = vadd.s32 %v16, 16
    %v19 = vadd.s32 %v16, 24
    %vm20 = vcmp.lt.s32.totalorder %v16, 0
    %v21 = vsub.s32 0, %v16
    %v22 = vsel %vm20, %v21, %v16
    %v23 = vshrl.u32 %v22, 4
    %v24 = vand.u32 %v22, 15
    %v25 = vsub.s32 0, %v24
    %v26 = vsel %vm20, %v25, %v24
    %vm27 = vcmp.lt.s32.totalorder %v17, 0
    %v28 = vsub.s32 0, %v17
    %v29 = vsel %vm27, %v28, %v17
    %v30 = vshrl.u32 %v29, 4
    %v31 = vand.u32 %v29, 15
    %v32 = vsub.s32 0, %v31
    %v33 = vsel %vm27, %v32, %v31
    %vm34 = vcmp.lt.s32.totalorder %v18, 0
    %v35 = vsub.s32 0, %v18
    %v36 = vsel %vm34, %v35, %v18
    %v37 = vshrl.u32 %v36, 4
    %v38 = vand.u32 %v36, 15
    %v39 = vsub.s32 0, %v38
    %v40 = vsel %vm34, %v39, %v38
    %vm41 = vcmp.lt.s32.totalorder %v19, 0
    %v42 = vsub.s32 0, %v19
    %v43 = vsel %vm41, %v42, %v19
    %v44 = vshrl.u32 %v43, 4
    %v45 = vand.u32 %v43, 15
    %v46 = vsub.s32 0, %v45
    %v47 = vsel %vm41, %v46, %v45
    %vm48 = vcmp.ne.s32.totalorder %v26, 0
    %vm49 = vcmp.ne.s32.totalorder %v33, 0
    %vm50 = vcmp.ne.s32.totalorder %v40, 0
    %vm51 = vcmp.ne.s32.totalorder %v47, 0
    %vm52 = vcmp.lt.s32.totalorder %v26, 0
    %vm53 = vcmp.lt.s32.totalorder %v33, 0
    %vm54 = vcmp.lt.s32.totalorder %v40, 0
    %vm55 = vcmp.lt.s32.totalorder %v47, 0
    %vm56 = vmand %vm52, %vm48
    %vm57 = vmand %vm53, %vm49
    %vm58 = vmand %vm54, %vm50
    %vm59 = vmand %vm55, %vm51
    %v60 = vadd.s32 %v26, 16
    %v61 = vadd.s32 %v33, 16
    %v62 = vadd.s32 %v40, 16
    %v63 = vadd.s32 %v47, 16
    %v64 = vsel %vm56, %v60, %v26
    %v65 = vsel %vm57, %v61, %v33
    %v66 = vsel %vm58, %v62, %v40
    %v67 = vsel %vm59, %v63, %v47
    %v68 = vld [vmem:[%s1] sm:$0xff]
    %v69 = vld [vmem:[%s1 + $0x8] sm:$0xff]
    %v70 = vld [vmem:[%s1 + $0x10] sm:$0xff]
    %v71 = vld [vmem:[%s1 + $0x18] sm:$0xff]
    %v72 = vld [vmem:[%s0] sm:$0xff]
    %v73 = vld [vmem:[%s0 + $0x8] sm:$0xff]
    %v74 = vld [vmem:[%s0 + $0x10] sm:$0xff]
    %v75 = vld [vmem:[%s0 + $0x18] sm:$0xff]
    %v76 = vld [vmem:[%s2] sm:$0xf]
    %v77 = vld [vmem:[%s2 + $0x4] sm:$0xf]
    %v78 = vld [vmem:[%s2 + $0x8] sm:$0xf]
    %v79 = vld [vmem:[%s2 + $0x10] sm:$0x1]
    %v80 = vmul.f32 %v72, %v68
    %v81 = vmul.f32 %v73, %v69
    %v82 = vmul.f32 %v74, %v70
    %v83 = vmul.f32 %v75, %v71
    %vm88 = vcmask 1040384
    %v89 = vrot.slane %v80, 7
    %v90 = vrot.slane %v81, 7
    %v91 = vsel %vm88, %v89, %v90
    %v92 = vrot.slane %v82, 7
    %v93 = vsel %vm88, %v90, %v92
    %v94 = vrot.slane %v83, 7
    %v95 = vsel %vm88, %v92, %v94
    %v101 = vsel %vm88, 0.0, %v89
    %v102 = vsel %vm88, %v94, 0.0
    %v103 = vadd.s32 %v64, 4294967295
    %v104 = vadd.s32 %v65, 4294967295
    %v105 = vadd.s32 %v66, 4294967295
    %v106 = vadd.s32 %v67, 4294967295
    %vm107 = vcmp.ge.s32.totalorder %v103, 0
    %vm108 = vcmp.ge.s32.totalorder %v104, 0
    %vm109 = vcmp.ge.s32.totalorder %v105, 0
    %vm110 = vcmp.ge.s32.totalorder %v106, 0
    %vm111 = vcmp.lt.s32.totalorder %v103, 16
    %vm112 = vcmp.lt.s32.totalorder %v104, 16
    %vm113 = vcmp.lt.s32.totalorder %v105, 16
    %vm114 = vcmp.lt.s32.totalorder %v106, 16
    %vm115 = vmand %vm107, %vm111
    %vm116 = vmand %vm108, %vm112
    %vm117 = vmand %vm109, %vm113
    %vm118 = vmand %vm110, %vm114
    %v119 = vsel %vm115, 1, 0
    %v120 = vsel %vm116, 1, 0
    %v121 = vsel %vm117, 1, 0
    %v122 = vsel %vm118, 1, 0
    %vm123 = vcmp.eq.s32.totalorder %v119, 1
    %vm124 = vcmp.eq.s32.totalorder %v120, 1
    %vm125 = vcmp.eq.s32.totalorder %v121, 1
    %vm126 = vcmp.eq.s32.totalorder %v122, 1
    %v127 = vsel %vm123, %v101, 0.0
    %v128 = vsel %vm124, %v91, 0.0
    %v129 = vsel %vm125, %v93, 0.0
    %v130 = vsel %vm126, %v95, 0.0
    %vm133 = vcmask 1046528
    %v134 = vrot.slane %v101, 1
    %v135 = vrot.slane %v91, 1
    %v136 = vsel %vm133, %v134, %v135
    %v137 = vrot.slane %v93, 1
    %v138 = vsel %vm133, %v135, %v137
    %v139 = vrot.slane %v95, 1
    %v140 = vsel %vm133, %v137, %v139
    %v141 = vrot.slane %v102, 1
    %v142 = vsel %vm133, %v139, %v141
    %vm143 = vcmask 31744
    %v144 = vsel %vm143, %v136, 0
    %v146 = vsel %vm143, %v138, 0
    %v148 = vsel %vm143, %v140, 0
    %v150 = vsel %vm143, %v142, 0
    %vm152 = vcmask 1043456
    %v154 = vsel %vm152, %v77, 0
    %156 = vmatprep.subr.mxu0 0.0
    %157 = vmatpush1.msra.mxu0 %v154
    %158 = vmatprep.subr.mxu0 0.0
    %159 = vmatpush1.msra.mxu0 0.0
    %160 = vmatprep.subr.mxu0 0.0
    %161 = vmatpush1.msra.mxu0 0.0
    %162 = vmatprep.subr.mxu0 0.0
    %163 = vmatpush1.msra.mxu0 0.0
    %164 = vmatprep.subr.mxu0 0.0
    %165 = vmatpush1.msra.mxu0 0.0
    %166 = vmatprep.subr.mxu0 0.0
    %167 = vmatpush1.msra.mxu0 0.0
    %168 = vmatprep.subr.mxu0 0.0
    %169 = vmatpush1.msra.mxu0 0.0
    %170 = vmatprep.subr.mxu0 0.0
    %171 = vmatpush1.msra.mxu0 0.0
    %172 = vmatprep.subr.mxu0 0.0
    %173 = vmatpush1.msra.mxu0 0.0
    %174 = vmatprep.subr.mxu0 0.0
    %175 = vmatpush1.msra.mxu0 0.0
    %176 = vmatprep.subr.mxu0 0.0
    %177 = vmatpush1.msra.mxu0 0.0
    %178 = vmatprep.subr.mxu0 0.0
    %179 = vmatpush1.msra.mxu0 0.0
    %180 = vmatprep.subr.mxu0 0.0
    %181 = vmatpush1.msra.mxu0 0.0
    %182 = vmatprep.subr.mxu0 0.0
    %183 = vmatpush1.msra.mxu0 0.0
    %184 = vmatprep.subr.mxu0 0.0
    %185 = vmatpush1.msra.mxu0 0.0
    %186 = vmatprep.subr.mxu0 0.0
    %187 = vmatpush1.msra.mxu0 0.0
    %188 = vmatprep.subr.mxu0 0.0
    %189 = vmatpush1.msra.mxu0 0.0
    %190 = vmatprep.subr.mxu0 0.0
    %191 = vmatpush1.msra.mxu0 0.0
    %192 = vmatprep.subr.mxu0 0.0
    %193 = vmatpush1.msra.mxu0 0.0
    %194 = vmatprep.subr.mxu0 0.0
    %195 = vmatpush1.msra.mxu0 0.0
    %196 = vmatprep.subr.mxu0 0.0
    %197 = vmatpush1.msra.mxu0 0.0
    %198 = vmatprep.subr.mxu0 0.0
    %199 = vmatpush1.msra.mxu0 0.0
    %200 = vmatprep.subr.mxu0 0.0
    %201 = vmatpush1.msra.mxu0 0.0
    %202 = vmatprep.subr.mxu0 0.0
    %203 = vmatpush1.msra.mxu0 0.0
    %204 = vmatprep.subr.mxu0 0.0
    %205 = vmatpush1.msra.mxu0 0.0
    %206 = vmatprep.subr.mxu0 0.0
    %207 = vmatpush1.msra.mxu0 0.0
    %208 = vmatprep.subr.mxu0 0.0
    %209 = vmatpush1.msra.mxu0 0.0
    %210 = vmatprep.subr.mxu0 0.0
    %211 = vmatpush1.msra.mxu0 0.0
    %212 = vmatprep.subr.mxu0 0.0
    %213 = vmatpush1.msra.mxu0 0.0
    %214 = vmatprep.subr.mxu0 0.0
    %215 = vmatpush1.msra.mxu0 0.0
    %216 = vmatprep.subr.mxu0 0.0
    %217 = vmatpush1.msra.mxu0 0.0
    %218 = vmatprep.subr.mxu0 0.0
    %219 = vmatpush1.msra.mxu0 0.0
    %220 = vmatprep.mubr.f32.mxu0 0.0
    %221 = vmatmul.mubr.f32.gmra.mrb[0].mxu0 %v144
    %v222 = vpop.f32.mrb[0].mxu0
    %v223 = vadd.f32 0.0, %v222
    %v224 = vpop.f32.mrb[0].mxu0
    %225 = vmatprep.mubr.f32.mxu0 0.0
    %226 = vmatmul.mubr.f32.gmra.mrb[0].mxu0 %v146
    %v227 = vpop.f32.mrb[0].mxu0
    %v228 = vadd.f32 0.0, %v227
    %v229 = vpop.f32.mrb[0].mxu0
    %230 = vmatprep.mubr.f32.mxu0 0.0
    %231 = vmatmul.mubr.f32.gmra.mrb[0].mxu0 %v148
    %v232 = vpop.f32.mrb[0].mxu0
    %v233 = vadd.f32 0.0, %v232
    %v234 = vpop.f32.mrb[0].mxu0
    %235 = vmatprep.mubr.f32.mxu0 0.0
    %236 = vmatmul.mubr.f32.gmra.mrb[0].mxu0 %v150
    %v237 = vpop.f32.mrb[0].mxu0
    %v238 = vadd.f32 0.0, %v237
    %v239 = vpop.f32.mrb[0].mxu0
    %240 = vdwg.mxu0
    %v242 = vsel %vm143, %v127, 0
    %v245 = vsel %vm143, %v128, 0
    %v248 = vsel %vm143, %v129, 0
    %v251 = vsel %vm143, %v130, 0
    %v254 = vsel %vm152, %v76, 0
    %256 = vmatprep.subr.mxu0 0.0
    %257 = vmatpush1.msra.mxu0 %v254
    %258 = vmatprep.subr.mxu0 0.0
    %259 = vmatpush1.msra.mxu0 0.0
    %260 = vmatprep.subr.mxu0 0.0
    %261 = vmatpush1.msra.mxu0 0.0
    %262 = vmatprep.subr.mxu0 0.0
    %263 = vmatpush1.msra.mxu0 0.0
    %264 = vmatprep.subr.mxu0 0.0
    %265 = vmatpush1.msra.mxu0 0.0
    %266 = vmatprep.subr.mxu0 0.0
    %267 = vmatpush1.msra.mxu0 0.0
    %268 = vmatprep.subr.mxu0 0.0
    %269 = vmatpush1.msra.mxu0 0.0
    %270 = vmatprep.subr.mxu0 0.0
    %271 = vmatpush1.msra.mxu0 0.0
    %272 = vmatprep.subr.mxu0 0.0
    %273 = vmatpush1.msra.mxu0 0.0
    %274 = vmatprep.subr.mxu0 0.0
    %275 = vmatpush1.msra.mxu0 0.0
    %276 = vmatprep.subr.mxu0 0.0
    %277 = vmatpush1.msra.mxu0 0.0
    %278 = vmatprep.subr.mxu0 0.0
    %279 = vmatpush1.msra.mxu0 0.0
    %280 = vmatprep.subr.mxu0 0.0
    %281 = vmatpush1.msra.mxu0 0.0
    %282 = vmatprep.subr.mxu0 0.0
    %283 = vmatpush1.msra.mxu0 0.0
    %284 = vmatprep.subr.mxu0 0.0
    %285 = vmatpush1.msra.mxu0 0.0
    %286 = vmatprep.subr.mxu0 0.0
    %287 = vmatpush1.msra.mxu0 0.0
    %288 = vmatprep.subr.mxu0 0.0
    %289 = vmatpush1.msra.mxu0 0.0
    %290 = vmatprep.subr.mxu0 0.0
    %291 = vmatpush1.msra.mxu0 0.0
    %292 = vmatprep.subr.mxu0 0.0
    %293 = vmatpush1.msra.mxu0 0.0
    %294 = vmatprep.subr.mxu0 0.0
    %295 = vmatpush1.msra.mxu0 0.0
    %296 = vmatprep.subr.mxu0 0.0
    %297 = vmatpush1.msra.mxu0 0.0
    %298 = vmatprep.subr.mxu0 0.0
    %299 = vmatpush1.msra.mxu0 0.0
    %300 = vmatprep.subr.mxu0 0.0
    %301 = vmatpush1.msra.mxu0 0.0
    %302 = vmatprep.subr.mxu0 0.0
    %303 = vmatpush1.msra.mxu0 0.0
    %304 = vmatprep.subr.mxu0 0.0
    %305 = vmatpush1.msra.mxu0 0.0
    %306 = vmatprep.subr.mxu0 0.0
    %307 = vmatpush1.msra.mxu0 0.0
    %308 = vmatprep.subr.mxu0 0.0
    %309 = vmatpush1.msra.mxu0 0.0
    %310 = vmatprep.subr.mxu0 0.0
    %311 = vmatpush1.msra.mxu0 0.0
    %312 = vmatprep.subr.mxu0 0.0
    %313 = vmatpush1.msra.mxu0 0.0
    %314 = vmatprep.subr.mxu0 0.0
    %315 = vmatpush1.msra.mxu0 0.0
    %316 = vmatprep.subr.mxu0 0.0
    %317 = vmatpush1.msra.mxu0 0.0
    %318 = vmatprep.subr.mxu0 0.0
    %319 = vmatpush1.msra.mxu0 0.0
    %320 = vmatprep.mubr.f32.mxu0 0.0
    %321 = vmatmul.mubr.f32.gmra.mrb[0].mxu0 %v242
    %v322 = vpop.f32.mrb[0].mxu0
    %v323 = vadd.f32 %v223, %v322
    %v324 = vpop.f32.mrb[0].mxu0
    %325 = vmatprep.mubr.f32.mxu0 0.0
    %326 = vmatmul.mubr.f32.gmra.mrb[0].mxu0 %v245
    %v327 = vpop.f32.mrb[0].mxu0
    %v328 = vadd.f32 %v228, %v327
    %v329 = vpop.f32.mrb[0].mxu0
    %330 = vmatprep.mubr.f32.mxu0 0.0
    %331 = vmatmul.mubr.f32.gmra.mrb[0].mxu0 %v248
    %v332 = vpop.f32.mrb[0].mxu0
    %v333 = vadd.f32 %v233, %v332
    %v334 = vpop.f32.mrb[0].mxu0
    %335 = vmatprep.mubr.f32.mxu0 0.0
    %336 = vmatmul.mubr.f32.gmra.mrb[0].mxu0 %v251
    %v337 = vpop.f32.mrb[0].mxu0
    %v338 = vadd.f32 %v238, %v337
    %v339 = vpop.f32.mrb[0].mxu0
    %340 = vdwg.mxu0
    %v341 = vadd.s32 %v64, 1
    %v342 = vadd.s32 %v65, 1
    %v343 = vadd.s32 %v66, 1
    %v344 = vadd.s32 %v67, 1
    %vm345 = vcmp.ge.s32.totalorder %v341, 0
    %vm346 = vcmp.ge.s32.totalorder %v342, 0
    %vm347 = vcmp.ge.s32.totalorder %v343, 0
    %vm348 = vcmp.ge.s32.totalorder %v344, 0
    %vm349 = vcmp.lt.s32.totalorder %v341, 16
    %vm350 = vcmp.lt.s32.totalorder %v342, 16
    %vm351 = vcmp.lt.s32.totalorder %v343, 16
    %vm352 = vcmp.lt.s32.totalorder %v344, 16
    %vm353 = vmand %vm345, %vm349
    %vm354 = vmand %vm346, %vm350
    %vm355 = vmand %vm347, %vm351
    %vm356 = vmand %vm348, %vm352
    %v357 = vsel %vm353, 1, 0
    %v358 = vsel %vm354, 1, 0
    %v359 = vsel %vm355, 1, 0
    %v360 = vsel %vm356, 1, 0
    %vm361 = vcmp.eq.s32.totalorder %v357, 1
    %vm362 = vcmp.eq.s32.totalorder %v358, 1
    %vm363 = vcmp.eq.s32.totalorder %v359, 1
    %vm364 = vcmp.eq.s32.totalorder %v360, 1
    %vm365 = vcmask 1045504
    %v366 = vrot.slane %v101, 2
    %v367 = vrot.slane %v91, 2
    %v368 = vsel %vm365, %v366, %v367
    %v369 = vrot.slane %v93, 2
    %v370 = vsel %vm365, %v367, %v369
    %v371 = vrot.slane %v95, 2
    %v372 = vsel %vm365, %v369, %v371
    %v373 = vrot.slane %v102, 2
    %v374 = vsel %vm365, %v371, %v373
    %v379 = vsel %vm361, %v368, 0.0
    %v380 = vsel %vm362, %v370, 0.0
    %v381 = vsel %vm363, %v372, 0.0
    %v382 = vsel %vm364, %v374, 0.0
    %v384 = vsel %vm143, %v379, 0
    %v387 = vsel %vm143, %v380, 0
    %v390 = vsel %vm143, %v381, 0
    %v393 = vsel %vm143, %v382, 0
    %v396 = vsel %vm152, %v78, 0
    %398 = vmatprep.subr.mxu0 0.0
    %399 = vmatpush1.msra.mxu0 %v396
    %400 = vmatprep.subr.mxu0 0.0
    %401 = vmatpush1.msra.mxu0 0.0
    %402 = vmatprep.subr.mxu0 0.0
    %403 = vmatpush1.msra.mxu0 0.0
    %404 = vmatprep.subr.mxu0 0.0
    %405 = vmatpush1.msra.mxu0 0.0
    %406 = vmatprep.subr.mxu0 0.0
    %407 = vmatpush1.msra.mxu0 0.0
    %408 = vmatprep.subr.mxu0 0.0
    %409 = vmatpush1.msra.mxu0 0.0
    %410 = vmatprep.subr.mxu0 0.0
    %411 = vmatpush1.msra.mxu0 0.0
    %412 = vmatprep.subr.mxu0 0.0
    %413 = vmatpush1.msra.mxu0 0.0
    %414 = vmatprep.subr.mxu0 0.0
    %415 = vmatpush1.msra.mxu0 0.0
    %416 = vmatprep.subr.mxu0 0.0
    %417 = vmatpush1.msra.mxu0 0.0
    %418 = vmatprep.subr.mxu0 0.0
    %419 = vmatpush1.msra.mxu0 0.0
    %420 = vmatprep.subr.mxu0 0.0
    %421 = vmatpush1.msra.mxu0 0.0
    %422 = vmatprep.subr.mxu0 0.0
    %423 = vmatpush1.msra.mxu0 0.0
    %424 = vmatprep.subr.mxu0 0.0
    %425 = vmatpush1.msra.mxu0 0.0
    %426 = vmatprep.subr.mxu0 0.0
    %427 = vmatpush1.msra.mxu0 0.0
    %428 = vmatprep.subr.mxu0 0.0
    %429 = vmatpush1.msra.mxu0 0.0
    %430 = vmatprep.subr.mxu0 0.0
    %431 = vmatpush1.msra.mxu0 0.0
    %432 = vmatprep.subr.mxu0 0.0
    %433 = vmatpush1.msra.mxu0 0.0
    %434 = vmatprep.subr.mxu0 0.0
    %435 = vmatpush1.msra.mxu0 0.0
    %436 = vmatprep.subr.mxu0 0.0
    %437 = vmatpush1.msra.mxu0 0.0
    %438 = vmatprep.subr.mxu0 0.0
    %439 = vmatpush1.msra.mxu0 0.0
    %440 = vmatprep.subr.mxu0 0.0
    %441 = vmatpush1.msra.mxu0 0.0
    %442 = vmatprep.subr.mxu0 0.0
    %443 = vmatpush1.msra.mxu0 0.0
    %444 = vmatprep.subr.mxu0 0.0
    %445 = vmatpush1.msra.mxu0 0.0
    %446 = vmatprep.subr.mxu0 0.0
    %447 = vmatpush1.msra.mxu0 0.0
    %448 = vmatprep.subr.mxu0 0.0
    %449 = vmatpush1.msra.mxu0 0.0
    %450 = vmatprep.subr.mxu0 0.0
    %451 = vmatpush1.msra.mxu0 0.0
    %452 = vmatprep.subr.mxu0 0.0
    %453 = vmatpush1.msra.mxu0 0.0
    %454 = vmatprep.subr.mxu0 0.0
    %455 = vmatpush1.msra.mxu0 0.0
    %456 = vmatprep.subr.mxu0 0.0
    %457 = vmatpush1.msra.mxu0 0.0
    %458 = vmatprep.subr.mxu0 0.0
    %459 = vmatpush1.msra.mxu0 0.0
    %460 = vmatprep.subr.mxu0 0.0
    %461 = vmatpush1.msra.mxu0 0.0
    %462 = vmatprep.mubr.f32.mxu0 0.0
    %463 = vmatmul.mubr.f32.gmra.mrb[0].mxu0 %v384
    %v464 = vpop.f32.mrb[0].mxu0
    %v465 = vadd.f32 0.0, %v464
    %v466 = vpop.f32.mrb[0].mxu0
    %467 = vmatprep.mubr.f32.mxu0 0.0
    %468 = vmatmul.mubr.f32.gmra.mrb[0].mxu0 %v387
    %v469 = vpop.f32.mrb[0].mxu0
    %v470 = vadd.f32 0.0, %v469
    %v471 = vpop.f32.mrb[0].mxu0
    %472 = vmatprep.mubr.f32.mxu0 0.0
    %473 = vmatmul.mubr.f32.gmra.mrb[0].mxu0 %v390
    %v474 = vpop.f32.mrb[0].mxu0
    %v475 = vadd.f32 0.0, %v474
    %v476 = vpop.f32.mrb[0].mxu0
    %477 = vmatprep.mubr.f32.mxu0 0.0
    %478 = vmatmul.mubr.f32.gmra.mrb[0].mxu0 %v393
    %v479 = vpop.f32.mrb[0].mxu0
    %v480 = vadd.f32 0.0, %v479
    %v481 = vpop.f32.mrb[0].mxu0
    %482 = vdwg.mxu0
    %v483 = vadd.f32 %v323, %v465
    %v484 = vadd.f32 %v328, %v470
    %v485 = vadd.f32 %v333, %v475
    %v486 = vadd.f32 %v338, %v480
    %v487 = vlaneseq
    %v488 = vshrl.u32 %v487, 7
    %v489 = vsub.s32 0, %v488
    %v490 = vrot.slane %v79, %v489
    %v491 = vadd.f32 %v483, %v490
    %v492 = vadd.f32 %v484, %v490
    %v493 = vadd.f32 %v485, %v490
    %v494 = vadd.f32 %v486, %v490
    %v495 = vmul.f32 %v491, %v68
    %v496 = vmul.f32 %v492, %v69
    %v497 = vmul.f32 %v493, %v70
    %v498 = vmul.f32 %v494, %v71
    %v499 = vld [vmem:[%s2 + $0x18] sm:$0x1]
    %v500 = vld [vmem:[%s2 + $0x20] sm:$0x1]
    %v501 = vld [vmem:[%s2 + $0x28] sm:$0xff]
    %v502 = vld [vmem:[%s2 + $0x30] sm:$0xff]
    %v503 = vld [vmem:[%s2 + $0x38] sm:$0xff]
    %v504 = vld [vmem:[%s2 + $0x40] sm:$0xff]
    %v505 = vld [vmem:[%s2 + $0x48] sm:$0xff]
    %v506 = vld [vmem:[%s2 + $0x50] sm:$0xff]
    %v507 = vld [vmem:[%s2 + $0x58] sm:$0x1]
    %v508 = vld [vmem:[%s2 + $0x60] sm:$0x1]
    %v509 = vld [vmem:[%s2 + $0x68] sm:$0x1]
    %v510 = vld [vmem:[%s2 + $0x70] sm:$0xff]
    %v511 = vld [vmem:[%s2 + $0x78] sm:$0x1]
    %vm512 = vcmask 130048
    %v513 = vsel %vm512, %v495, 0.0
    %v514 = vsel %vm512, %v496, 0.0
    %v515 = vadd.f32 %v513, %v514
    %v516 = vsel %vm512, %v497, 0.0
    %v517 = vadd.f32 %v515, %v516
    %v518 = vsel %vm512, %v498, 0.0
    %v519 = vadd.f32 %v517, %v518
    %v520 = vrot.slane %v519, 4
    %v521 = vadd.f32 %v519, %v520
    %v522 = vrot.slane %v521, 2
    %v523 = vadd.f32 %v521, %v522
    %v524 = vrot.slane %v523, 1
    %v525 = vadd.f32 %v523, %v524
    %v526 = vmul.f32 %v525, 0.03125
    %v527 = vsub.f32 %v495, %v526
    %v528 = vsub.f32 %v496, %v526
    %v529 = vsub.f32 %v497, %v526
    %v530 = vsub.f32 %v498, %v526
    %v531 = vmul.f32 %v527, %v527
    %v532 = vmul.f32 %v528, %v528
    %v533 = vmul.f32 %v529, %v529
    %v534 = vmul.f32 %v530, %v530
    %v535 = vsel %vm512, %v531, 0.0
    %v536 = vsel %vm512, %v532, 0.0
    %v537 = vadd.f32 %v535, %v536
    %v538 = vsel %vm512, %v533, 0.0
    %v539 = vadd.f32 %v537, %v538
    %v540 = vsel %vm512, %v534, 0.0
    %v541 = vadd.f32 %v539, %v540
    %v542 = vrot.slane %v541, 4
    %v543 = vadd.f32 %v541, %v542
    %v544 = vrot.slane %v543, 2
    %v545 = vadd.f32 %v543, %v544
    %v546 = vrot.slane %v545, 1
    %v547 = vadd.f32 %v545, %v546
    %v548 = vmul.f32 %v547, 0.03125
    %v549 = vadd.f32 %v548, 1e-05
    %v550 = vrsqrt.pop %v549
    %v551 = vmul.f32 %v550, %v499
    %v552 = vlaneseq
    %v553 = vshrl.u32 %v552, 7
    %v554 = vsub.s32 0, %v553
    %v555 = vrot.slane %v551, %v554
    %v556 = vmul.f32 %v527, %v555
    %v557 = vmul.f32 %v528, %v555
    %v558 = vmul.f32 %v529, %v555
    %v559 = vmul.f32 %v530, %v555
    %v560 = vlaneseq
    %v561 = vshrl.u32 %v560, 7
    %v562 = vsub.s32 0, %v561
    %v563 = vrot.slane %v500, %v562
    %v564 = vadd.f32 %v556, %v563
    %v565 = vadd.f32 %v557, %v563
    %v566 = vadd.f32 %v558, %v563
    %v567 = vadd.f32 %v559, %v563
    %v568 = vmax.f32 %v564, 0.0
    %v569 = vmax.f32 %v565, 0.0
    %v570 = vmax.f32 %v566, 0.0
    %v571 = vmax.f32 %v567, 0.0
    %v572 = vmul.f32 %v568, %v68
    %v573 = vmul.f32 %v569, %v69
    %v574 = vmul.f32 %v570, %v70
    %v575 = vmul.f32 %v571, %v71
    %v580 = vrot.slane %v572, 7
    %v581 = vrot.slane %v573, 7
    %v582 = vsel %vm88, %v580, %v581
    %v583 = vrot.slane %v574, 7
    %v584 = vsel %vm88, %v581, %v583
    %v585 = vrot.slane %v575, 7
    %v586 = vsel %vm88, %v583, %v585
    %v592 = vsel %vm88, 0.0, %v580
    %v593 = vsel %vm88, %v585, 0.0
    %v594 = vsel %vm123, %v592, 0.0
    %v595 = vsel %vm124, %v582, 0.0
    %v596 = vsel %vm125, %v584, 0.0
    %v597 = vsel %vm126, %v586, 0.0
    %v600 = vrot.slane %v592, 1
    %v601 = vrot.slane %v582, 1
    %v602 = vsel %vm133, %v600, %v601
    %v603 = vrot.slane %v584, 1
    %v604 = vsel %vm133, %v601, %v603
    %v605 = vrot.slane %v586, 1
    %v606 = vsel %vm133, %v603, %v605
    %v607 = vrot.slane %v593, 1
    %v608 = vsel %vm133, %v605, %v607
    %v609 = vsel %vm512, %v602, 0
    %v611 = vsel %vm512, %v604, 0
    %v613 = vsel %vm512, %v606, 0
    %v615 = vsel %vm512, %v608, 0
    %617 = vmatprep.subr.mxu0 0.0
    %618 = vmatpush1.msra.mxu0 %v503
    %619 = vmatprep.subr.mxu0 0.0
    %620 = vmatpush1.msra.mxu0 %v504
    %621 = vmatprep.subr.mxu0 0.0
    %622 = vmatpush1.msra.mxu0 0.0
    %623 = vmatprep.subr.mxu0 0.0
    %624 = vmatpush1.msra.mxu0 0.0
    %625 = vmatprep.subr.mxu0 0.0
    %626 = vmatpush1.msra.mxu0 0.0
    %627 = vmatprep.subr.mxu0 0.0
    %628 = vmatpush1.msra.mxu0 0.0
    %629 = vmatprep.subr.mxu0 0.0
    %630 = vmatpush1.msra.mxu0 0.0
    %631 = vmatprep.subr.mxu0 0.0
    %632 = vmatpush1.msra.mxu0 0.0
    %633 = vmatprep.subr.mxu0 0.0
    %634 = vmatpush1.msra.mxu0 0.0
    %635 = vmatprep.subr.mxu0 0.0
    %636 = vmatpush1.msra.mxu0 0.0
    %637 = vmatprep.subr.mxu0 0.0
    %638 = vmatpush1.msra.mxu0 0.0
    %639 = vmatprep.subr.mxu0 0.0
    %640 = vmatpush1.msra.mxu0 0.0
    %641 = vmatprep.subr.mxu0 0.0
    %642 = vmatpush1.msra.mxu0 0.0
    %643 = vmatprep.subr.mxu0 0.0
    %644 = vmatpush1.msra.mxu0 0.0
    %645 = vmatprep.subr.mxu0 0.0
    %646 = vmatpush1.msra.mxu0 0.0
    %647 = vmatprep.subr.mxu0 0.0
    %648 = vmatpush1.msra.mxu0 0.0
    %649 = vmatprep.subr.mxu0 0.0
    %650 = vmatpush1.msra.mxu0 0.0
    %651 = vmatprep.subr.mxu0 0.0
    %652 = vmatpush1.msra.mxu0 0.0
    %653 = vmatprep.subr.mxu0 0.0
    %654 = vmatpush1.msra.mxu0 0.0
    %655 = vmatprep.subr.mxu0 0.0
    %656 = vmatpush1.msra.mxu0 0.0
    %657 = vmatprep.subr.mxu0 0.0
    %658 = vmatpush1.msra.mxu0 0.0
    %659 = vmatprep.subr.mxu0 0.0
    %660 = vmatpush1.msra.mxu0 0.0
    %661 = vmatprep.subr.mxu0 0.0
    %662 = vmatpush1.msra.mxu0 0.0
    %663 = vmatprep.subr.mxu0 0.0
    %664 = vmatpush1.msra.mxu0 0.0
    %665 = vmatprep.subr.mxu0 0.0
    %666 = vmatpush1.msra.mxu0 0.0
    %667 = vmatprep.subr.mxu0 0.0
    %668 = vmatpush1.msra.mxu0 0.0
    %669 = vmatprep.subr.mxu0 0.0
    %670 = vmatpush1.msra.mxu0 0.0
    %671 = vmatprep.subr.mxu0 0.0
    %672 = vmatpush1.msra.mxu0 0.0
    %673 = vmatprep.subr.mxu0 0.0
    %674 = vmatpush1.msra.mxu0 0.0
    %675 = vmatprep.subr.mxu0 0.0
    %676 = vmatpush1.msra.mxu0 0.0
    %677 = vmatprep.subr.mxu0 0.0
    %678 = vmatpush1.msra.mxu0 0.0
    %679 = vmatprep.subr.mxu0 0.0
    %680 = vmatpush1.msra.mxu0 0.0
    %681 = vmatprep.mubr.f32.mxu0 0.0
    %682 = vmatmul.mubr.f32.gmra.mrb[0].mxu0 %v609
    %v683 = vpop.f32.mrb[0].mxu0
    %v684 = vadd.f32 0.0, %v683
    %v685 = vpop.f32.mrb[0].mxu0
    %686 = vmatprep.mubr.f32.mxu0 0.0
    %687 = vmatmul.mubr.f32.gmra.mrb[0].mxu0 %v611
    %v688 = vpop.f32.mrb[0].mxu0
    %v689 = vadd.f32 0.0, %v688
    %v690 = vpop.f32.mrb[0].mxu0
    %691 = vmatprep.mubr.f32.mxu0 0.0
    %692 = vmatmul.mubr.f32.gmra.mrb[0].mxu0 %v613
    %v693 = vpop.f32.mrb[0].mxu0
    %v694 = vadd.f32 0.0, %v693
    %v695 = vpop.f32.mrb[0].mxu0
    %696 = vmatprep.mubr.f32.mxu0 0.0
    %697 = vmatmul.mubr.f32.gmra.mrb[0].mxu0 %v615
    %v698 = vpop.f32.mrb[0].mxu0
    %v699 = vadd.f32 0.0, %v698
    %v700 = vpop.f32.mrb[0].mxu0
    %701 = vdwg.mxu0
    %v703 = vsel %vm512, %v594, 0
    %v706 = vsel %vm512, %v595, 0
    %v709 = vsel %vm512, %v596, 0
    %v712 = vsel %vm512, %v597, 0
    %714 = vmatprep.subr.mxu0 0.0
    %715 = vmatpush1.msra.mxu0 %v501
    %716 = vmatprep.subr.mxu0 0.0
    %717 = vmatpush1.msra.mxu0 %v502
    %718 = vmatprep.subr.mxu0 0.0
    %719 = vmatpush1.msra.mxu0 0.0
    %720 = vmatprep.subr.mxu0 0.0
    %721 = vmatpush1.msra.mxu0 0.0
    %722 = vmatprep.subr.mxu0 0.0
    %723 = vmatpush1.msra.mxu0 0.0
    %724 = vmatprep.subr.mxu0 0.0
    %725 = vmatpush1.msra.mxu0 0.0
    %726 = vmatprep.subr.mxu0 0.0
    %727 = vmatpush1.msra.mxu0 0.0
    %728 = vmatprep.subr.mxu0 0.0
    %729 = vmatpush1.msra.mxu0 0.0
    %730 = vmatprep.subr.mxu0 0.0
    %731 = vmatpush1.msra.mxu0 0.0
    %732 = vmatprep.subr.mxu0 0.0
    %733 = vmatpush1.msra.mxu0 0.0
    %734 = vmatprep.subr.mxu0 0.0
    %735 = vmatpush1.msra.mxu0 0.0
    %736 = vmatprep.subr.mxu0 0.0
    %737 = vmatpush1.msra.mxu0 0.0
    %738 = vmatprep.subr.mxu0 0.0
    %739 = vmatpush1.msra.mxu0 0.0
    %740 = vmatprep.subr.mxu0 0.0
    %741 = vmatpush1.msra.mxu0 0.0
    %742 = vmatprep.subr.mxu0 0.0
    %743 = vmatpush1.msra.mxu0 0.0
    %744 = vmatprep.subr.mxu0 0.0
    %745 = vmatpush1.msra.mxu0 0.0
    %746 = vmatprep.subr.mxu0 0.0
    %747 = vmatpush1.msra.mxu0 0.0
    %748 = vmatprep.subr.mxu0 0.0
    %749 = vmatpush1.msra.mxu0 0.0
    %750 = vmatprep.subr.mxu0 0.0
    %751 = vmatpush1.msra.mxu0 0.0
    %752 = vmatprep.subr.mxu0 0.0
    %753 = vmatpush1.msra.mxu0 0.0
    %754 = vmatprep.subr.mxu0 0.0
    %755 = vmatpush1.msra.mxu0 0.0
    %756 = vmatprep.subr.mxu0 0.0
    %757 = vmatpush1.msra.mxu0 0.0
    %758 = vmatprep.subr.mxu0 0.0
    %759 = vmatpush1.msra.mxu0 0.0
    %760 = vmatprep.subr.mxu0 0.0
    %761 = vmatpush1.msra.mxu0 0.0
    %762 = vmatprep.subr.mxu0 0.0
    %763 = vmatpush1.msra.mxu0 0.0
    %764 = vmatprep.subr.mxu0 0.0
    %765 = vmatpush1.msra.mxu0 0.0
    %766 = vmatprep.subr.mxu0 0.0
    %767 = vmatpush1.msra.mxu0 0.0
    %768 = vmatprep.subr.mxu0 0.0
    %769 = vmatpush1.msra.mxu0 0.0
    %770 = vmatprep.subr.mxu0 0.0
    %771 = vmatpush1.msra.mxu0 0.0
    %772 = vmatprep.subr.mxu0 0.0
    %773 = vmatpush1.msra.mxu0 0.0
    %774 = vmatprep.subr.mxu0 0.0
    %775 = vmatpush1.msra.mxu0 0.0
    %776 = vmatprep.subr.mxu0 0.0
    %777 = vmatpush1.msra.mxu0 0.0
    %778 = vmatprep.mubr.f32.mxu0 0.0
    %779 = vmatmul.mubr.f32.gmra.mrb[0].mxu0 %v703
    %v780 = vpop.f32.mrb[0].mxu0
    %v781 = vadd.f32 %v684, %v780
    %v782 = vpop.f32.mrb[0].mxu0
    %783 = vmatprep.mubr.f32.mxu0 0.0
    %784 = vmatmul.mubr.f32.gmra.mrb[0].mxu0 %v706
    %v785 = vpop.f32.mrb[0].mxu0
    %v786 = vadd.f32 %v689, %v785
    %v787 = vpop.f32.mrb[0].mxu0
    %788 = vmatprep.mubr.f32.mxu0 0.0
    %789 = vmatmul.mubr.f32.gmra.mrb[0].mxu0 %v709
    %v790 = vpop.f32.mrb[0].mxu0
    %v791 = vadd.f32 %v694, %v790
    %v792 = vpop.f32.mrb[0].mxu0
    %793 = vmatprep.mubr.f32.mxu0 0.0
    %794 = vmatmul.mubr.f32.gmra.mrb[0].mxu0 %v712
    %v795 = vpop.f32.mrb[0].mxu0
    %v796 = vadd.f32 %v699, %v795
    %v797 = vpop.f32.mrb[0].mxu0
    %798 = vdwg.mxu0
    %v799 = vrot.slane %v592, 2
    %v800 = vrot.slane %v582, 2
    %v801 = vsel %vm365, %v799, %v800
    %v802 = vrot.slane %v584, 2
    %v803 = vsel %vm365, %v800, %v802
    %v804 = vrot.slane %v586, 2
    %v805 = vsel %vm365, %v802, %v804
    %v806 = vrot.slane %v593, 2
    %v807 = vsel %vm365, %v804, %v806
    %v812 = vsel %vm361, %v801, 0.0
    %v813 = vsel %vm362, %v803, 0.0
    %v814 = vsel %vm363, %v805, 0.0
    %v815 = vsel %vm364, %v807, 0.0
    %v817 = vsel %vm512, %v812, 0
    %v820 = vsel %vm512, %v813, 0
    %v823 = vsel %vm512, %v814, 0
    %v826 = vsel %vm512, %v815, 0
    %828 = vmatprep.subr.mxu0 0.0
    %829 = vmatpush1.msra.mxu0 %v505
    %830 = vmatprep.subr.mxu0 0.0
    %831 = vmatpush1.msra.mxu0 %v506
    %832 = vmatprep.subr.mxu0 0.0
    %833 = vmatpush1.msra.mxu0 0.0
    %834 = vmatprep.subr.mxu0 0.0
    %835 = vmatpush1.msra.mxu0 0.0
    %836 = vmatprep.subr.mxu0 0.0
    %837 = vmatpush1.msra.mxu0 0.0
    %838 = vmatprep.subr.mxu0 0.0
    %839 = vmatpush1.msra.mxu0 0.0
    %840 = vmatprep.subr.mxu0 0.0
    %841 = vmatpush1.msra.mxu0 0.0
    %842 = vmatprep.subr.mxu0 0.0
    %843 = vmatpush1.msra.mxu0 0.0
    %844 = vmatprep.subr.mxu0 0.0
    %845 = vmatpush1.msra.mxu0 0.0
    %846 = vmatprep.subr.mxu0 0.0
    %847 = vmatpush1.msra.mxu0 0.0
    %848 = vmatprep.subr.mxu0 0.0
    %849 = vmatpush1.msra.mxu0 0.0
    %850 = vmatprep.subr.mxu0 0.0
    %851 = vmatpush1.msra.mxu0 0.0
    %852 = vmatprep.subr.mxu0 0.0
    %853 = vmatpush1.msra.mxu0 0.0
    %854 = vmatprep.subr.mxu0 0.0
    %855 = vmatpush1.msra.mxu0 0.0
    %856 = vmatprep.subr.mxu0 0.0
    %857 = vmatpush1.msra.mxu0 0.0
    %858 = vmatprep.subr.mxu0 0.0
    %859 = vmatpush1.msra.mxu0 0.0
    %860 = vmatprep.subr.mxu0 0.0
    %861 = vmatpush1.msra.mxu0 0.0
    %862 = vmatprep.subr.mxu0 0.0
    %863 = vmatpush1.msra.mxu0 0.0
    %864 = vmatprep.subr.mxu0 0.0
    %865 = vmatpush1.msra.mxu0 0.0
    %866 = vmatprep.subr.mxu0 0.0
    %867 = vmatpush1.msra.mxu0 0.0
    %868 = vmatprep.subr.mxu0 0.0
    %869 = vmatpush1.msra.mxu0 0.0
    %870 = vmatprep.subr.mxu0 0.0
    %871 = vmatpush1.msra.mxu0 0.0
    %872 = vmatprep.subr.mxu0 0.0
    %873 = vmatpush1.msra.mxu0 0.0
    %874 = vmatprep.subr.mxu0 0.0
    %875 = vmatpush1.msra.mxu0 0.0
    %876 = vmatprep.subr.mxu0 0.0
    %877 = vmatpush1.msra.mxu0 0.0
    %878 = vmatprep.subr.mxu0 0.0
    %879 = vmatpush1.msra.mxu0 0.0
    %880 = vmatprep.subr.mxu0 0.0
    %881 = vmatpush1.msra.mxu0 0.0
    %882 = vmatprep.subr.mxu0 0.0
    %883 = vmatpush1.msra.mxu0 0.0
    %884 = vmatprep.subr.mxu0 0.0
    %885 = vmatpush1.msra.mxu0 0.0
    %886 = vmatprep.subr.mxu0 0.0
    %887 = vmatpush1.msra.mxu0 0.0
    %888 = vmatprep.subr.mxu0 0.0
    %889 = vmatpush1.msra.mxu0 0.0
    %890 = vmatprep.subr.mxu0 0.0
    %891 = vmatpush1.msra.mxu0 0.0
    %892 = vmatprep.mubr.f32.mxu0 0.0
    %893 = vmatmul.mubr.f32.gmra.mrb[0].mxu0 %v817
    %v894 = vpop.f32.mrb[0].mxu0
    %v895 = vadd.f32 0.0, %v894
    %v896 = vpop.f32.mrb[0].mxu0
    %897 = vmatprep.mubr.f32.mxu0 0.0
    %898 = vmatmul.mubr.f32.gmra.mrb[0].mxu0 %v820
    %v899 = vpop.f32.mrb[0].mxu0
    %v900 = vadd.f32 0.0, %v899
    %v901 = vpop.f32.mrb[0].mxu0
    %902 = vmatprep.mubr.f32.mxu0 0.0
    %903 = vmatmul.mubr.f32.gmra.mrb[0].mxu0 %v823
    %v904 = vpop.f32.mrb[0].mxu0
    %v905 = vadd.f32 0.0, %v904
    %v906 = vpop.f32.mrb[0].mxu0
    %907 = vmatprep.mubr.f32.mxu0 0.0
    %908 = vmatmul.mubr.f32.gmra.mrb[0].mxu0 %v826
    %v909 = vpop.f32.mrb[0].mxu0
    %v910 = vadd.f32 0.0, %v909
    %v911 = vpop.f32.mrb[0].mxu0
    %912 = vdwg.mxu0
    %v913 = vadd.f32 %v781, %v895
    %v914 = vadd.f32 %v786, %v900
    %v915 = vadd.f32 %v791, %v905
    %v916 = vadd.f32 %v796, %v910
    %v917 = vlaneseq
    %v918 = vshrl.u32 %v917, 7
    %v919 = vsub.s32 0, %v918
    %v920 = vrot.slane %v507, %v919
    %v921 = vadd.f32 %v913, %v920
    %v922 = vadd.f32 %v914, %v920
    %v923 = vadd.f32 %v915, %v920
    %v924 = vadd.f32 %v916, %v920
    %v925 = vmul.f32 %v921, %v68
    %v926 = vmul.f32 %v922, %v69
    %v927 = vmul.f32 %v923, %v70
    %v928 = vmul.f32 %v924, %v71
    %vm929 = vcmask 64512
    %v930 = vsel %vm929, %v925, 0.0
    %v931 = vsel %vm929, %v926, 0.0
    %v932 = vadd.f32 %v930, %v931
    %v933 = vsel %vm929, %v927, 0.0
    %v934 = vadd.f32 %v932, %v933
    %v935 = vsel %vm929, %v928, 0.0
    %v936 = vadd.f32 %v934, %v935
    %v937 = vrot.slane %v936, 4
    %v938 = vadd.f32 %v936, %v937
    %v939 = vrot.slane %v938, 2
    %v940 = vadd.f32 %v938, %v939
    %v941 = vrot.slane %v940, 1
    %v942 = vadd.f32 %v940, %v941
    %v943 = vmul.f32 %v942, 0.03125
    %v944 = vsub.f32 %v925, %v943
    %v945 = vsub.f32 %v926, %v943
    %v946 = vsub.f32 %v927, %v943
    %v947 = vsub.f32 %v928, %v943
    %v948 = vmul.f32 %v944, %v944
    %v949 = vmul.f32 %v945, %v945
    %v950 = vmul.f32 %v946, %v946
    %v951 = vmul.f32 %v947, %v947
    %v952 = vsel %vm929, %v948, 0.0
    %v953 = vsel %vm929, %v949, 0.0
    %v954 = vadd.f32 %v952, %v953
    %v955 = vsel %vm929, %v950, 0.0
    %v956 = vadd.f32 %v954, %v955
    %v957 = vsel %vm929, %v951, 0.0
    %v958 = vadd.f32 %v956, %v957
    %v959 = vrot.slane %v958, 4
    %v960 = vadd.f32 %v958, %v959
    %v961 = vrot.slane %v960, 2
    %v962 = vadd.f32 %v960, %v961
    %v963 = vrot.slane %v962, 1
    %v964 = vadd.f32 %v962, %v963
    %v965 = vmul.f32 %v964, 0.03125
    %v966 = vadd.f32 %v965, 1e-05
    %v967 = vrsqrt.pop %v966
    %v968 = vmul.f32 %v967, %v508
    %v969 = vlaneseq
    %v970 = vshrl.u32 %v969, 7
    %v971 = vsub.s32 0, %v970
    %v972 = vrot.slane %v968, %v971
    %v973 = vmul.f32 %v944, %v972
    %v974 = vmul.f32 %v945, %v972
    %v975 = vmul.f32 %v946, %v972
    %v976 = vmul.f32 %v947, %v972
    %v977 = vlaneseq
    %v978 = vshrl.u32 %v977, 7
    %v979 = vsub.s32 0, %v978
    %v980 = vrot.slane %v509, %v979
    %v981 = vadd.f32 %v973, %v980
    %v982 = vadd.f32 %v974, %v980
    %v983 = vadd.f32 %v975, %v980
    %v984 = vadd.f32 %v976, %v980
    %v985 = vmax.f32 %v981, 0.0
    %v986 = vmax.f32 %v982, 0.0
    %v987 = vmax.f32 %v983, 0.0
    %v988 = vmax.f32 %v984, 0.0
    %v989 = vmul.f32 %v985, %v68
    %v990 = vmul.f32 %v986, %v69
    %v991 = vmul.f32 %v987, %v70
    %v992 = vmul.f32 %v988, %v71
    %v993 = vlaneseq
    %v994 = vshrl.u32 %v993, 7
    %v995 = vsub.s32 0, %v994
    %v996 = vrot.slane %v511, %v995
    %v998 = vsel %vm929, %v989, 0
    %v1001 = vsel %vm929, %v990, 0
    %v1004 = vsel %vm929, %v991, 0
    %v1007 = vsel %vm929, %v992, 0
    %1009 = vmatprep.subr.mxu0 0.0
    %1010 = vmatpush1.msra.mxu0 %v510
    %1011 = vmatprep.subr.mxu0 0.0
    %1012 = vmatpush1.msra.mxu0 0.0
    %1013 = vmatprep.subr.mxu0 0.0
    %1014 = vmatpush1.msra.mxu0 0.0
    %1015 = vmatprep.subr.mxu0 0.0
    %1016 = vmatpush1.msra.mxu0 0.0
    %1017 = vmatprep.subr.mxu0 0.0
    %1018 = vmatpush1.msra.mxu0 0.0
    %1019 = vmatprep.subr.mxu0 0.0
    %1020 = vmatpush1.msra.mxu0 0.0
    %1021 = vmatprep.subr.mxu0 0.0
    %1022 = vmatpush1.msra.mxu0 0.0
    %1023 = vmatprep.subr.mxu0 0.0
    %1024 = vmatpush1.msra.mxu0 0.0
    %1025 = vmatprep.subr.mxu0 0.0
    %1026 = vmatpush1.msra.mxu0 0.0
    %1027 = vmatprep.subr.mxu0 0.0
    %1028 = vmatpush1.msra.mxu0 0.0
    %1029 = vmatprep.subr.mxu0 0.0
    %1030 = vmatpush1.msra.mxu0 0.0
    %1031 = vmatprep.subr.mxu0 0.0
    %1032 = vmatpush1.msra.mxu0 0.0
    %1033 = vmatprep.subr.mxu0 0.0
    %1034 = vmatpush1.msra.mxu0 0.0
    %1035 = vmatprep.subr.mxu0 0.0
    %1036 = vmatpush1.msra.mxu0 0.0
    %1037 = vmatprep.subr.mxu0 0.0
    %1038 = vmatpush1.msra.mxu0 0.0
    %1039 = vmatprep.subr.mxu0 0.0
    %1040 = vmatpush1.msra.mxu0 0.0
    %1041 = vmatprep.subr.mxu0 0.0
    %1042 = vmatpush1.msra.mxu0 0.0
    %1043 = vmatprep.subr.mxu0 0.0
    %1044 = vmatpush1.msra.mxu0 0.0
    %1045 = vmatprep.subr.mxu0 0.0
    %1046 = vmatpush1.msra.mxu0 0.0
    %1047 = vmatprep.subr.mxu0 0.0
    %1048 = vmatpush1.msra.mxu0 0.0
    %1049 = vmatprep.subr.mxu0 0.0
    %1050 = vmatpush1.msra.mxu0 0.0
    %1051 = vmatprep.subr.mxu0 0.0
    %1052 = vmatpush1.msra.mxu0 0.0
    %1053 = vmatprep.subr.mxu0 0.0
    %1054 = vmatpush1.msra.mxu0 0.0
    %1055 = vmatprep.subr.mxu0 0.0
    %1056 = vmatpush1.msra.mxu0 0.0
    %1057 = vmatprep.subr.mxu0 0.0
    %1058 = vmatpush1.msra.mxu0 0.0
    %1059 = vmatprep.subr.mxu0 0.0
    %1060 = vmatpush1.msra.mxu0 0.0
    %1061 = vmatprep.subr.mxu0 0.0
    %1062 = vmatpush1.msra.mxu0 0.0
    %1063 = vmatprep.subr.mxu0 0.0
    %1064 = vmatpush1.msra.mxu0 0.0
    %1065 = vmatprep.subr.mxu0 0.0
    %1066 = vmatpush1.msra.mxu0 0.0
    %1067 = vmatprep.subr.mxu0 0.0
    %1068 = vmatpush1.msra.mxu0 0.0
    %1069 = vmatprep.subr.mxu0 0.0
    %1070 = vmatpush1.msra.mxu0 0.0
    %1071 = vmatprep.subr.mxu0 0.0
    %1072 = vmatpush1.msra.mxu0 0.0
    %1073 = vmatprep.mubr.f32.mxu0 0.0
    %1074 = vmatmul.mubr.f32.gmra.mrb[0].mxu0 %v998
    %v1075 = vpop.f32.mrb[0].mxu0
    %v1076 = vadd.f32 %v996, %v1075
    %v1077 = vpop.f32.mrb[0].mxu0
    %1078 = vmatprep.mubr.f32.mxu0 0.0
    %1079 = vmatmul.mubr.f32.gmra.mrb[0].mxu0 %v1001
    %v1080 = vpop.f32.mrb[0].mxu0
    %v1081 = vadd.f32 %v996, %v1080
    %v1082 = vpop.f32.mrb[0].mxu0
    %1083 = vmatprep.mubr.f32.mxu0 0.0
    %1084 = vmatmul.mubr.f32.gmra.mrb[0].mxu0 %v1004
    %v1085 = vpop.f32.mrb[0].mxu0
    %v1086 = vadd.f32 %v996, %v1085
    %v1087 = vpop.f32.mrb[0].mxu0
    %1088 = vmatprep.mubr.f32.mxu0 0.0
    %1089 = vmatmul.mubr.f32.gmra.mrb[0].mxu0 %v1007
    %v1090 = vpop.f32.mrb[0].mxu0
    %v1091 = vadd.f32 %v996, %v1090
    %v1092 = vpop.f32.mrb[0].mxu0
    %1093 = vdwg.mxu0
    %v1094 = vmul.f32 %v1076, %v68
    %v1095 = vmul.f32 %v1081, %v69
    %v1096 = vmul.f32 %v1086, %v70
    %v1097 = vmul.f32 %v1091, %v71
    %v1098 = vadd.f32 %v495, %v1094
    %v1099 = vadd.f32 %v496, %v1095
    %v1100 = vadd.f32 %v497, %v1096
    %v1101 = vadd.f32 %v498, %v1097
    %v1102 = vld [vmem:[%s2 + $0x80] sm:$0x1]
    %v1103 = vld [vmem:[%s2 + $0x88] sm:$0x1]
    %v1104 = vld [vmem:[%s2 + $0x90] sm:$0xff]
    %v1105 = vld [vmem:[%s2 + $0x98] sm:$0xff]
    %v1106 = vld [vmem:[%s2 + $0xa0] sm:$0xff]
    %v1107 = vld [vmem:[%s2 + $0xa8] sm:$0xff]
    %v1108 = vld [vmem:[%s2 + $0xb0] sm:$0xff]
    %v1109 = vld [vmem:[%s2 + $0xb8] sm:$0xff]
    %v1110 = vld [vmem:[%s2 + $0xc0] sm:$0x1]
    %v1111 = vld [vmem:[%s2 + $0xc8] sm:$0x1]
    %v1112 = vld [vmem:[%s2 + $0xd0] sm:$0x1]
    %v1113 = vld [vmem:[%s2 + $0xd8] sm:$0xff]
    %v1114 = vld [vmem:[%s2 + $0xe0] sm:$0x1]
    %v1115 = vsel %vm512, %v1098, 0.0
    %v1116 = vsel %vm512, %v1099, 0.0
    %v1117 = vadd.f32 %v1115, %v1116
    %v1118 = vsel %vm512, %v1100, 0.0
    %v1119 = vadd.f32 %v1117, %v1118
    %v1120 = vsel %vm512, %v1101, 0.0
    %v1121 = vadd.f32 %v1119, %v1120
    %v1122 = vrot.slane %v1121, 4
    %v1123 = vadd.f32 %v1121, %v1122
    %v1124 = vrot.slane %v1123, 2
    %v1125 = vadd.f32 %v1123, %v1124
    %v1126 = vrot.slane %v1125, 1
    %v1127 = vadd.f32 %v1125, %v1126
    %v1128 = vmul.f32 %v1127, 0.03125
    %v1129 = vsub.f32 %v1098, %v1128
    %v1130 = vsub.f32 %v1099, %v1128
    %v1131 = vsub.f32 %v1100, %v1128
    %v1132 = vsub.f32 %v1101, %v1128
    %v1133 = vmul.f32 %v1129, %v1129
    %v1134 = vmul.f32 %v1130, %v1130
    %v1135 = vmul.f32 %v1131, %v1131
    %v1136 = vmul.f32 %v1132, %v1132
    %v1137 = vsel %vm512, %v1133, 0.0
    %v1138 = vsel %vm512, %v1134, 0.0
    %v1139 = vadd.f32 %v1137, %v1138
    %v1140 = vsel %vm512, %v1135, 0.0
    %v1141 = vadd.f32 %v1139, %v1140
    %v1142 = vsel %vm512, %v1136, 0.0
    %v1143 = vadd.f32 %v1141, %v1142
    %v1144 = vrot.slane %v1143, 4
    %v1145 = vadd.f32 %v1143, %v1144
    %v1146 = vrot.slane %v1145, 2
    %v1147 = vadd.f32 %v1145, %v1146
    %v1148 = vrot.slane %v1147, 1
    %v1149 = vadd.f32 %v1147, %v1148
    %v1150 = vmul.f32 %v1149, 0.03125
    %v1151 = vadd.f32 %v1150, 1e-05
    %v1152 = vrsqrt.pop %v1151
    %v1153 = vmul.f32 %v1152, %v1102
    %v1154 = vlaneseq
    %v1155 = vshrl.u32 %v1154, 7
    %v1156 = vsub.s32 0, %v1155
    %v1157 = vrot.slane %v1153, %v1156
    %v1158 = vmul.f32 %v1129, %v1157
    %v1159 = vmul.f32 %v1130, %v1157
    %v1160 = vmul.f32 %v1131, %v1157
    %v1161 = vmul.f32 %v1132, %v1157
    %v1162 = vlaneseq
    %v1163 = vshrl.u32 %v1162, 7
    %v1164 = vsub.s32 0, %v1163
    %v1165 = vrot.slane %v1103, %v1164
    %v1166 = vadd.f32 %v1158, %v1165
    %v1167 = vadd.f32 %v1159, %v1165
    %v1168 = vadd.f32 %v1160, %v1165
    %v1169 = vadd.f32 %v1161, %v1165
    %v1170 = vmax.f32 %v1166, 0.0
    %v1171 = vmax.f32 %v1167, 0.0
    %v1172 = vmax.f32 %v1168, 0.0
    %v1173 = vmax.f32 %v1169, 0.0
    %v1174 = vmul.f32 %v1170, %v68
    %v1175 = vmul.f32 %v1171, %v69
    %v1176 = vmul.f32 %v1172, %v70
    %v1177 = vmul.f32 %v1173, %v71
    %vm1182 = vcmask 1041408
    %v1183 = vrot.slane %v1174, 6
    %v1184 = vrot.slane %v1175, 6
    %v1185 = vsel %vm1182, %v1183, %v1184
    %v1186 = vrot.slane %v1176, 6
    %v1187 = vsel %vm1182, %v1184, %v1186
    %v1188 = vrot.slane %v1177, 6
    %v1189 = vsel %vm1182, %v1186, %v1188
    %v1195 = vsel %vm1182, 0.0, %v1183
    %v1196 = vsel %vm1182, %v1188, 0.0
    %v1197 = vadd.s32 %v64, 4294967294
    %v1198 = vadd.s32 %v65, 4294967294
    %v1199 = vadd.s32 %v66, 4294967294
    %v1200 = vadd.s32 %v67, 4294967294
    %vm1201 = vcmp.ge.s32.totalorder %v1197, 0
    %vm1202 = vcmp.ge.s32.totalorder %v1198, 0
    %vm1203 = vcmp.ge.s32.totalorder %v1199, 0
    %vm1204 = vcmp.ge.s32.totalorder %v1200, 0
    %vm1205 = vcmp.lt.s32.totalorder %v1197, 16
    %vm1206 = vcmp.lt.s32.totalorder %v1198, 16
    %vm1207 = vcmp.lt.s32.totalorder %v1199, 16
    %vm1208 = vcmp.lt.s32.totalorder %v1200, 16
    %vm1209 = vmand %vm1201, %vm1205
    %vm1210 = vmand %vm1202, %vm1206
    %vm1211 = vmand %vm1203, %vm1207
    %vm1212 = vmand %vm1204, %vm1208
    %v1213 = vsel %vm1209, 1, 0
    %v1214 = vsel %vm1210, 1, 0
    %v1215 = vsel %vm1211, 1, 0
    %v1216 = vsel %vm1212, 1, 0
    %vm1217 = vcmp.eq.s32.totalorder %v1213, 1
    %vm1218 = vcmp.eq.s32.totalorder %v1214, 1
    %vm1219 = vcmp.eq.s32.totalorder %v1215, 1
    %vm1220 = vcmp.eq.s32.totalorder %v1216, 1
    %v1221 = vsel %vm1217, %v1195, 0.0
    %v1222 = vsel %vm1218, %v1185, 0.0
    %v1223 = vsel %vm1219, %v1187, 0.0
    %v1224 = vsel %vm1220, %v1189, 0.0
    %v1227 = vrot.slane %v1195, 2
    %v1228 = vrot.slane %v1185, 2
    %v1229 = vsel %vm365, %v1227, %v1228
    %v1230 = vrot.slane %v1187, 2
    %v1231 = vsel %vm365, %v1228, %v1230
    %v1232 = vrot.slane %v1189, 2
    %v1233 = vsel %vm365, %v1230, %v1232
    %v1234 = vrot.slane %v1196, 2
    %v1235 = vsel %vm365, %v1232, %v1234
    %v1236 = vsel %vm512, %v1229, 0
    %v1238 = vsel %vm512, %v1231, 0
    %v1240 = vsel %vm512, %v1233, 0
    %v1242 = vsel %vm512, %v1235, 0
    %1244 = vmatprep.subr.mxu0 0.0
    %1245 = vmatpush1.msra.mxu0 %v1106
    %1246 = vmatprep.subr.mxu0 0.0
    %1247 = vmatpush1.msra.mxu0 %v1107
    %1248 = vmatprep.subr.mxu0 0.0
    %1249 = vmatpush1.msra.mxu0 0.0
    %1250 = vmatprep.subr.mxu0 0.0
    %1251 = vmatpush1.msra.mxu0 0.0
    %1252 = vmatprep.subr.mxu0 0.0
    %1253 = vmatpush1.msra.mxu0 0.0
    %1254 = vmatprep.subr.mxu0 0.0
    %1255 = vmatpush1.msra.mxu0 0.0
    %1256 = vmatprep.subr.mxu0 0.0
    %1257 = vmatpush1.msra.mxu0 0.0
    %1258 = vmatprep.subr.mxu0 0.0
    %1259 = vmatpush1.msra.mxu0 0.0
    %1260 = vmatprep.subr.mxu0 0.0
    %1261 = vmatpush1.msra.mxu0 0.0
    %1262 = vmatprep.subr.mxu0 0.0
    %1263 = vmatpush1.msra.mxu0 0.0
    %1264 = vmatprep.subr.mxu0 0.0
    %1265 = vmatpush1.msra.mxu0 0.0
    %1266 = vmatprep.subr.mxu0 0.0
    %1267 = vmatpush1.msra.mxu0 0.0
    %1268 = vmatprep.subr.mxu0 0.0
    %1269 = vmatpush1.msra.mxu0 0.0
    %1270 = vmatprep.subr.mxu0 0.0
    %1271 = vmatpush1.msra.mxu0 0.0
    %1272 = vmatprep.subr.mxu0 0.0
    %1273 = vmatpush1.msra.mxu0 0.0
    %1274 = vmatprep.subr.mxu0 0.0
    %1275 = vmatpush1.msra.mxu0 0.0
    %1276 = vmatprep.subr.mxu0 0.0
    %1277 = vmatpush1.msra.mxu0 0.0
    %1278 = vmatprep.subr.mxu0 0.0
    %1279 = vmatpush1.msra.mxu0 0.0
    %1280 = vmatprep.subr.mxu0 0.0
    %1281 = vmatpush1.msra.mxu0 0.0
    %1282 = vmatprep.subr.mxu0 0.0
    %1283 = vmatpush1.msra.mxu0 0.0
    %1284 = vmatprep.subr.mxu0 0.0
    %1285 = vmatpush1.msra.mxu0 0.0
    %1286 = vmatprep.subr.mxu0 0.0
    %1287 = vmatpush1.msra.mxu0 0.0
    %1288 = vmatprep.subr.mxu0 0.0
    %1289 = vmatpush1.msra.mxu0 0.0
    %1290 = vmatprep.subr.mxu0 0.0
    %1291 = vmatpush1.msra.mxu0 0.0
    %1292 = vmatprep.subr.mxu0 0.0
    %1293 = vmatpush1.msra.mxu0 0.0
    %1294 = vmatprep.subr.mxu0 0.0
    %1295 = vmatpush1.msra.mxu0 0.0
    %1296 = vmatprep.subr.mxu0 0.0
    %1297 = vmatpush1.msra.mxu0 0.0
    %1298 = vmatprep.subr.mxu0 0.0
    %1299 = vmatpush1.msra.mxu0 0.0
    %1300 = vmatprep.subr.mxu0 0.0
    %1301 = vmatpush1.msra.mxu0 0.0
    %1302 = vmatprep.subr.mxu0 0.0
    %1303 = vmatpush1.msra.mxu0 0.0
    %1304 = vmatprep.subr.mxu0 0.0
    %1305 = vmatpush1.msra.mxu0 0.0
    %1306 = vmatprep.subr.mxu0 0.0
    %1307 = vmatpush1.msra.mxu0 0.0
    %1308 = vmatprep.mubr.f32.mxu0 0.0
    %1309 = vmatmul.mubr.f32.gmra.mrb[0].mxu0 %v1236
    %v1310 = vpop.f32.mrb[0].mxu0
    %v1311 = vadd.f32 0.0, %v1310
    %v1312 = vpop.f32.mrb[0].mxu0
    %1313 = vmatprep.mubr.f32.mxu0 0.0
    %1314 = vmatmul.mubr.f32.gmra.mrb[0].mxu0 %v1238
    %v1315 = vpop.f32.mrb[0].mxu0
    %v1316 = vadd.f32 0.0, %v1315
    %v1317 = vpop.f32.mrb[0].mxu0
    %1318 = vmatprep.mubr.f32.mxu0 0.0
    %1319 = vmatmul.mubr.f32.gmra.mrb[0].mxu0 %v1240
    %v1320 = vpop.f32.mrb[0].mxu0
    %v1321 = vadd.f32 0.0, %v1320
    %v1322 = vpop.f32.mrb[0].mxu0
    %1323 = vmatprep.mubr.f32.mxu0 0.0
    %1324 = vmatmul.mubr.f32.gmra.mrb[0].mxu0 %v1242
    %v1325 = vpop.f32.mrb[0].mxu0
    %v1326 = vadd.f32 0.0, %v1325
    %v1327 = vpop.f32.mrb[0].mxu0
    %1328 = vdwg.mxu0
    %v1330 = vsel %vm512, %v1221, 0
    %v1333 = vsel %vm512, %v1222, 0
    %v1336 = vsel %vm512, %v1223, 0
    %v1339 = vsel %vm512, %v1224, 0
    %1341 = vmatprep.subr.mxu0 0.0
    %1342 = vmatpush1.msra.mxu0 %v1104
    %1343 = vmatprep.subr.mxu0 0.0
    %1344 = vmatpush1.msra.mxu0 %v1105
    %1345 = vmatprep.subr.mxu0 0.0
    %1346 = vmatpush1.msra.mxu0 0.0
    %1347 = vmatprep.subr.mxu0 0.0
    %1348 = vmatpush1.msra.mxu0 0.0
    %1349 = vmatprep.subr.mxu0 0.0
    %1350 = vmatpush1.msra.mxu0 0.0
    %1351 = vmatprep.subr.mxu0 0.0
    %1352 = vmatpush1.msra.mxu0 0.0
    %1353 = vmatprep.subr.mxu0 0.0
    %1354 = vmatpush1.msra.mxu0 0.0
    %1355 = vmatprep.subr.mxu0 0.0
    %1356 = vmatpush1.msra.mxu0 0.0
    %1357 = vmatprep.subr.mxu0 0.0
    %1358 = vmatpush1.msra.mxu0 0.0
    %1359 = vmatprep.subr.mxu0 0.0
    %1360 = vmatpush1.msra.mxu0 0.0
    %1361 = vmatprep.subr.mxu0 0.0
    %1362 = vmatpush1.msra.mxu0 0.0
    %1363 = vmatprep.subr.mxu0 0.0
    %1364 = vmatpush1.msra.mxu0 0.0
    %1365 = vmatprep.subr.mxu0 0.0
    %1366 = vmatpush1.msra.mxu0 0.0
    %1367 = vmatprep.subr.mxu0 0.0
    %1368 = vmatpush1.msra.mxu0 0.0
    %1369 = vmatprep.subr.mxu0 0.0
    %1370 = vmatpush1.msra.mxu0 0.0
    %1371 = vmatprep.subr.mxu0 0.0
    %1372 = vmatpush1.msra.mxu0 0.0
    %1373 = vmatprep.subr.mxu0 0.0
    %1374 = vmatpush1.msra.mxu0 0.0
    %1375 = vmatprep.subr.mxu0 0.0
    %1376 = vmatpush1.msra.mxu0 0.0
    %1377 = vmatprep.subr.mxu0 0.0
    %1378 = vmatpush1.msra.mxu0 0.0
    %1379 = vmatprep.subr.mxu0 0.0
    %1380 = vmatpush1.msra.mxu0 0.0
    %1381 = vmatprep.subr.mxu0 0.0
    %1382 = vmatpush1.msra.mxu0 0.0
    %1383 = vmatprep.subr.mxu0 0.0
    %1384 = vmatpush1.msra.mxu0 0.0
    %1385 = vmatprep.subr.mxu0 0.0
    %1386 = vmatpush1.msra.mxu0 0.0
    %1387 = vmatprep.subr.mxu0 0.0
    %1388 = vmatpush1.msra.mxu0 0.0
    %1389 = vmatprep.subr.mxu0 0.0
    %1390 = vmatpush1.msra.mxu0 0.0
    %1391 = vmatprep.subr.mxu0 0.0
    %1392 = vmatpush1.msra.mxu0 0.0
    %1393 = vmatprep.subr.mxu0 0.0
    %1394 = vmatpush1.msra.mxu0 0.0
    %1395 = vmatprep.subr.mxu0 0.0
    %1396 = vmatpush1.msra.mxu0 0.0
    %1397 = vmatprep.subr.mxu0 0.0
    %1398 = vmatpush1.msra.mxu0 0.0
    %1399 = vmatprep.subr.mxu0 0.0
    %1400 = vmatpush1.msra.mxu0 0.0
    %1401 = vmatprep.subr.mxu0 0.0
    %1402 = vmatpush1.msra.mxu0 0.0
    %1403 = vmatprep.subr.mxu0 0.0
    %1404 = vmatpush1.msra.mxu0 0.0
    %1405 = vmatprep.mubr.f32.mxu0 0.0
    %1406 = vmatmul.mubr.f32.gmra.mrb[0].mxu0 %v1330
    %v1407 = vpop.f32.mrb[0].mxu0
    %v1408 = vadd.f32 %v1311, %v1407
    %v1409 = vpop.f32.mrb[0].mxu0
    %1410 = vmatprep.mubr.f32.mxu0 0.0
    %1411 = vmatmul.mubr.f32.gmra.mrb[0].mxu0 %v1333
    %v1412 = vpop.f32.mrb[0].mxu0
    %v1413 = vadd.f32 %v1316, %v1412
    %v1414 = vpop.f32.mrb[0].mxu0
    %1415 = vmatprep.mubr.f32.mxu0 0.0
    %1416 = vmatmul.mubr.f32.gmra.mrb[0].mxu0 %v1336
    %v1417 = vpop.f32.mrb[0].mxu0
    %v1418 = vadd.f32 %v1321, %v1417
    %v1419 = vpop.f32.mrb[0].mxu0
    %1420 = vmatprep.mubr.f32.mxu0 0.0
    %1421 = vmatmul.mubr.f32.gmra.mrb[0].mxu0 %v1339
    %v1422 = vpop.f32.mrb[0].mxu0
    %v1423 = vadd.f32 %v1326, %v1422
    %v1424 = vpop.f32.mrb[0].mxu0
    %1425 = vdwg.mxu0
    %v1426 = vadd.s32 %v64, 2
    %v1427 = vadd.s32 %v65, 2
    %v1428 = vadd.s32 %v66, 2
    %v1429 = vadd.s32 %v67, 2
    %vm1430 = vcmp.ge.s32.totalorder %v1426, 0
    %vm1431 = vcmp.ge.s32.totalorder %v1427, 0
    %vm1432 = vcmp.ge.s32.totalorder %v1428, 0
    %vm1433 = vcmp.ge.s32.totalorder %v1429, 0
    %vm1434 = vcmp.lt.s32.totalorder %v1426, 16
    %vm1435 = vcmp.lt.s32.totalorder %v1427, 16
    %vm1436 = vcmp.lt.s32.totalorder %v1428, 16
    %vm1437 = vcmp.lt.s32.totalorder %v1429, 16
    %vm1438 = vmand %vm1430, %vm1434
    %vm1439 = vmand %vm1431, %vm1435
    %vm1440 = vmand %vm1432, %vm1436
    %vm1441 = vmand %vm1433, %vm1437
    %v1442 = vsel %vm1438, 1, 0
    %v1443 = vsel %vm1439, 1, 0
    %v1444 = vsel %vm1440, 1, 0
    %v1445 = vsel %vm1441, 1, 0
    %vm1446 = vcmp.eq.s32.totalorder %v1442, 1
    %vm1447 = vcmp.eq.s32.totalorder %v1443, 1
    %vm1448 = vcmp.eq.s32.totalorder %v1444, 1
    %vm1449 = vcmp.eq.s32.totalorder %v1445, 1
    %v1450 = vrot.slane %v1195, 4
    %v1451 = vrot.slane %v1185, 4
    %v1452 = vsel %vm152, %v1450, %v1451
    %v1453 = vrot.slane %v1187, 4
    %v1454 = vsel %vm152, %v1451, %v1453
    %v1455 = vrot.slane %v1189, 4
    %v1456 = vsel %vm152, %v1453, %v1455
    %v1457 = vrot.slane %v1196, 4
    %v1458 = vsel %vm152, %v1455, %v1457
    %v1463 = vsel %vm1446, %v1452, 0.0
    %v1464 = vsel %vm1447, %v1454, 0.0
    %v1465 = vsel %vm1448, %v1456, 0.0
    %v1466 = vsel %vm1449, %v1458, 0.0
    %v1468 = vsel %vm512, %v1463, 0
    %v1471 = vsel %vm512, %v1464, 0
    %v1474 = vsel %vm512, %v1465, 0
    %v1477 = vsel %vm512, %v1466, 0
    %1479 = vmatprep.subr.mxu0 0.0
    %1480 = vmatpush1.msra.mxu0 %v1108
    %1481 = vmatprep.subr.mxu0 0.0
    %1482 = vmatpush1.msra.mxu0 %v1109
    %1483 = vmatprep.subr.mxu0 0.0
    %1484 = vmatpush1.msra.mxu0 0.0
    %1485 = vmatprep.subr.mxu0 0.0
    %1486 = vmatpush1.msra.mxu0 0.0
    %1487 = vmatprep.subr.mxu0 0.0
    %1488 = vmatpush1.msra.mxu0 0.0
    %1489 = vmatprep.subr.mxu0 0.0
    %1490 = vmatpush1.msra.mxu0 0.0
    %1491 = vmatprep.subr.mxu0 0.0
    %1492 = vmatpush1.msra.mxu0 0.0
    %1493 = vmatprep.subr.mxu0 0.0
    %1494 = vmatpush1.msra.mxu0 0.0
    %1495 = vmatprep.subr.mxu0 0.0
    %1496 = vmatpush1.msra.mxu0 0.0
    %1497 = vmatprep.subr.mxu0 0.0
    %1498 = vmatpush1.msra.mxu0 0.0
    %1499 = vmatprep.subr.mxu0 0.0
    %1500 = vmatpush1.msra.mxu0 0.0
    %1501 = vmatprep.subr.mxu0 0.0
    %1502 = vmatpush1.msra.mxu0 0.0
    %1503 = vmatprep.subr.mxu0 0.0
    %1504 = vmatpush1.msra.mxu0 0.0
    %1505 = vmatprep.subr.mxu0 0.0
    %1506 = vmatpush1.msra.mxu0 0.0
    %1507 = vmatprep.subr.mxu0 0.0
    %1508 = vmatpush1.msra.mxu0 0.0
    %1509 = vmatprep.subr.mxu0 0.0
    %1510 = vmatpush1.msra.mxu0 0.0
    %1511 = vmatprep.subr.mxu0 0.0
    %1512 = vmatpush1.msra.mxu0 0.0
    %1513 = vmatprep.subr.mxu0 0.0
    %1514 = vmatpush1.msra.mxu0 0.0
    %1515 = vmatprep.subr.mxu0 0.0
    %1516 = vmatpush1.msra.mxu0 0.0
    %1517 = vmatprep.subr.mxu0 0.0
    %1518 = vmatpush1.msra.mxu0 0.0
    %1519 = vmatprep.subr.mxu0 0.0
    %1520 = vmatpush1.msra.mxu0 0.0
    %1521 = vmatprep.subr.mxu0 0.0
    %1522 = vmatpush1.msra.mxu0 0.0
    %1523 = vmatprep.subr.mxu0 0.0
    %1524 = vmatpush1.msra.mxu0 0.0
    %1525 = vmatprep.subr.mxu0 0.0
    %1526 = vmatpush1.msra.mxu0 0.0
    %1527 = vmatprep.subr.mxu0 0.0
    %1528 = vmatpush1.msra.mxu0 0.0
    %1529 = vmatprep.subr.mxu0 0.0
    %1530 = vmatpush1.msra.mxu0 0.0
    %1531 = vmatprep.subr.mxu0 0.0
    %1532 = vmatpush1.msra.mxu0 0.0
    %1533 = vmatprep.subr.mxu0 0.0
    %1534 = vmatpush1.msra.mxu0 0.0
    %1535 = vmatprep.subr.mxu0 0.0
    %1536 = vmatpush1.msra.mxu0 0.0
    %1537 = vmatprep.subr.mxu0 0.0
    %1538 = vmatpush1.msra.mxu0 0.0
    %1539 = vmatprep.subr.mxu0 0.0
    %1540 = vmatpush1.msra.mxu0 0.0
    %1541 = vmatprep.subr.mxu0 0.0
    %1542 = vmatpush1.msra.mxu0 0.0
    %1543 = vmatprep.mubr.f32.mxu0 0.0
    %1544 = vmatmul.mubr.f32.gmra.mrb[0].mxu0 %v1468
    %v1545 = vpop.f32.mrb[0].mxu0
    %v1546 = vadd.f32 0.0, %v1545
    %v1547 = vpop.f32.mrb[0].mxu0
    %1548 = vmatprep.mubr.f32.mxu0 0.0
    %1549 = vmatmul.mubr.f32.gmra.mrb[0].mxu0 %v1471
    %v1550 = vpop.f32.mrb[0].mxu0
    %v1551 = vadd.f32 0.0, %v1550
    %v1552 = vpop.f32.mrb[0].mxu0
    %1553 = vmatprep.mubr.f32.mxu0 0.0
    %1554 = vmatmul.mubr.f32.gmra.mrb[0].mxu0 %v1474
    %v1555 = vpop.f32.mrb[0].mxu0
    %v1556 = vadd.f32 0.0, %v1555
    %v1557 = vpop.f32.mrb[0].mxu0
    %1558 = vmatprep.mubr.f32.mxu0 0.0
    %1559 = vmatmul.mubr.f32.gmra.mrb[0].mxu0 %v1477
    %v1560 = vpop.f32.mrb[0].mxu0
    %v1561 = vadd.f32 0.0, %v1560
    %v1562 = vpop.f32.mrb[0].mxu0
    %1563 = vdwg.mxu0
    %v1564 = vadd.f32 %v1408, %v1546
    %v1565 = vadd.f32 %v1413, %v1551
    %v1566 = vadd.f32 %v1418, %v1556
    %v1567 = vadd.f32 %v1423, %v1561
    %v1568 = vlaneseq
    %v1569 = vshrl.u32 %v1568, 7
    %v1570 = vsub.s32 0, %v1569
    %v1571 = vrot.slane %v1110, %v1570
    %v1572 = vadd.f32 %v1564, %v1571
    %v1573 = vadd.f32 %v1565, %v1571
    %v1574 = vadd.f32 %v1566, %v1571
    %v1575 = vadd.f32 %v1567, %v1571
    %v1576 = vmul.f32 %v1572, %v68
    %v1577 = vmul.f32 %v1573, %v69
    %v1578 = vmul.f32 %v1574, %v70
    %v1579 = vmul.f32 %v1575, %v71
    %v1580 = vsel %vm929, %v1576, 0.0
    %v1581 = vsel %vm929, %v1577, 0.0
    %v1582 = vadd.f32 %v1580, %v1581
    %v1583 = vsel %vm929, %v1578, 0.0
    %v1584 = vadd.f32 %v1582, %v1583
    %v1585 = vsel %vm929, %v1579, 0.0
    %v1586 = vadd.f32 %v1584, %v1585
    %v1587 = vrot.slane %v1586, 4
    %v1588 = vadd.f32 %v1586, %v1587
    %v1589 = vrot.slane %v1588, 2
    %v1590 = vadd.f32 %v1588, %v1589
    %v1591 = vrot.slane %v1590, 1
    %v1592 = vadd.f32 %v1590, %v1591
    %v1593 = vmul.f32 %v1592, 0.03125
    %v1594 = vsub.f32 %v1576, %v1593
    %v1595 = vsub.f32 %v1577, %v1593
    %v1596 = vsub.f32 %v1578, %v1593
    %v1597 = vsub.f32 %v1579, %v1593
    %v1598 = vmul.f32 %v1594, %v1594
    %v1599 = vmul.f32 %v1595, %v1595
    %v1600 = vmul.f32 %v1596, %v1596
    %v1601 = vmul.f32 %v1597, %v1597
    %v1602 = vsel %vm929, %v1598, 0.0
    %v1603 = vsel %vm929, %v1599, 0.0
    %v1604 = vadd.f32 %v1602, %v1603
    %v1605 = vsel %vm929, %v1600, 0.0
    %v1606 = vadd.f32 %v1604, %v1605
    %v1607 = vsel %vm929, %v1601, 0.0
    %v1608 = vadd.f32 %v1606, %v1607
    %v1609 = vrot.slane %v1608, 4
    %v1610 = vadd.f32 %v1608, %v1609
    %v1611 = vrot.slane %v1610, 2
    %v1612 = vadd.f32 %v1610, %v1611
    %v1613 = vrot.slane %v1612, 1
    %v1614 = vadd.f32 %v1612, %v1613
    %v1615 = vmul.f32 %v1614, 0.03125
    %v1616 = vadd.f32 %v1615, 1e-05
    %v1617 = vrsqrt.pop %v1616
    %v1618 = vmul.f32 %v1617, %v1111
    %v1619 = vlaneseq
    %v1620 = vshrl.u32 %v1619, 7
    %v1621 = vsub.s32 0, %v1620
    %v1622 = vrot.slane %v1618, %v1621
    %v1623 = vmul.f32 %v1594, %v1622
    %v1624 = vmul.f32 %v1595, %v1622
    %v1625 = vmul.f32 %v1596, %v1622
    %v1626 = vmul.f32 %v1597, %v1622
    %v1627 = vlaneseq
    %v1628 = vshrl.u32 %v1627, 7
    %v1629 = vsub.s32 0, %v1628
    %v1630 = vrot.slane %v1112, %v1629
    %v1631 = vadd.f32 %v1623, %v1630
    %v1632 = vadd.f32 %v1624, %v1630
    %v1633 = vadd.f32 %v1625, %v1630
    %v1634 = vadd.f32 %v1626, %v1630
    %v1635 = vmax.f32 %v1631, 0.0
    %v1636 = vmax.f32 %v1632, 0.0
    %v1637 = vmax.f32 %v1633, 0.0
    %v1638 = vmax.f32 %v1634, 0.0
    %v1639 = vmul.f32 %v1635, %v68
    %v1640 = vmul.f32 %v1636, %v69
    %v1641 = vmul.f32 %v1637, %v70
    %v1642 = vmul.f32 %v1638, %v71
    %v1643 = vlaneseq
    %v1644 = vshrl.u32 %v1643, 7
    %v1645 = vsub.s32 0, %v1644
    %v1646 = vrot.slane %v1114, %v1645
    %v1648 = vsel %vm929, %v1639, 0
    %v1651 = vsel %vm929, %v1640, 0
    %v1654 = vsel %vm929, %v1641, 0
    %v1657 = vsel %vm929, %v1642, 0
    %1659 = vmatprep.subr.mxu0 0.0
    %1660 = vmatpush1.msra.mxu0 %v1113
    %1661 = vmatprep.subr.mxu0 0.0
    %1662 = vmatpush1.msra.mxu0 0.0
    %1663 = vmatprep.subr.mxu0 0.0
    %1664 = vmatpush1.msra.mxu0 0.0
    %1665 = vmatprep.subr.mxu0 0.0
    %1666 = vmatpush1.msra.mxu0 0.0
    %1667 = vmatprep.subr.mxu0 0.0
    %1668 = vmatpush1.msra.mxu0 0.0
    %1669 = vmatprep.subr.mxu0 0.0
    %1670 = vmatpush1.msra.mxu0 0.0
    %1671 = vmatprep.subr.mxu0 0.0
    %1672 = vmatpush1.msra.mxu0 0.0
    %1673 = vmatprep.subr.mxu0 0.0
    %1674 = vmatpush1.msra.mxu0 0.0
    %1675 = vmatprep.subr.mxu0 0.0
    %1676 = vmatpush1.msra.mxu0 0.0
    %1677 = vmatprep.subr.mxu0 0.0
    %1678 = vmatpush1.msra.mxu0 0.0
    %1679 = vmatprep.subr.mxu0 0.0
    %1680 = vmatpush1.msra.mxu0 0.0
    %1681 = vmatprep.subr.mxu0 0.0
    %1682 = vmatpush1.msra.mxu0 0.0
    %1683 = vmatprep.subr.mxu0 0.0
    %1684 = vmatpush1.msra.mxu0 0.0
    %1685 = vmatprep.subr.mxu0 0.0
    %1686 = vmatpush1.msra.mxu0 0.0
    %1687 = vmatprep.subr.mxu0 0.0
    %1688 = vmatpush1.msra.mxu0 0.0
    %1689 = vmatprep.subr.mxu0 0.0
    %1690 = vmatpush1.msra.mxu0 0.0
    %1691 = vmatprep.subr.mxu0 0.0
    %1692 = vmatpush1.msra.mxu0 0.0
    %1693 = vmatprep.subr.mxu0 0.0
    %1694 = vmatpush1.msra.mxu0 0.0
    %1695 = vmatprep.subr.mxu0 0.0
    %1696 = vmatpush1.msra.mxu0 0.0
    %1697 = vmatprep.subr.mxu0 0.0
    %1698 = vmatpush1.msra.mxu0 0.0
    %1699 = vmatprep.subr.mxu0 0.0
    %1700 = vmatpush1.msra.mxu0 0.0
    %1701 = vmatprep.subr.mxu0 0.0
    %1702 = vmatpush1.msra.mxu0 0.0
    %1703 = vmatprep.subr.mxu0 0.0
    %1704 = vmatpush1.msra.mxu0 0.0
    %1705 = vmatprep.subr.mxu0 0.0
    %1706 = vmatpush1.msra.mxu0 0.0
    %1707 = vmatprep.subr.mxu0 0.0
    %1708 = vmatpush1.msra.mxu0 0.0
    %1709 = vmatprep.subr.mxu0 0.0
    %1710 = vmatpush1.msra.mxu0 0.0
    %1711 = vmatprep.subr.mxu0 0.0
    %1712 = vmatpush1.msra.mxu0 0.0
    %1713 = vmatprep.subr.mxu0 0.0
    %1714 = vmatpush1.msra.mxu0 0.0
    %1715 = vmatprep.subr.mxu0 0.0
    %1716 = vmatpush1.msra.mxu0 0.0
    %1717 = vmatprep.subr.mxu0 0.0
    %1718 = vmatpush1.msra.mxu0 0.0
    %1719 = vmatprep.subr.mxu0 0.0
    %1720 = vmatpush1.msra.mxu0 0.0
    %1721 = vmatprep.subr.mxu0 0.0
    %1722 = vmatpush1.msra.mxu0 0.0
    %1723 = vmatprep.mubr.f32.mxu0 0.0
    %1724 = vmatmul.mubr.f32.gmra.mrb[0].mxu0 %v1648
    %v1725 = vpop.f32.mrb[0].mxu0
    %v1726 = vadd.f32 %v1646, %v1725
    %v1727 = vpop.f32.mrb[0].mxu0
    %1728 = vmatprep.mubr.f32.mxu0 0.0
    %1729 = vmatmul.mubr.f32.gmra.mrb[0].mxu0 %v1651
    %v1730 = vpop.f32.mrb[0].mxu0
    %v1731 = vadd.f32 %v1646, %v1730
    %v1732 = vpop.f32.mrb[0].mxu0
    %1733 = vmatprep.mubr.f32.mxu0 0.0
    %1734 = vmatmul.mubr.f32.gmra.mrb[0].mxu0 %v1654
    %v1735 = vpop.f32.mrb[0].mxu0
    %v1736 = vadd.f32 %v1646, %v1735
    %v1737 = vpop.f32.mrb[0].mxu0
    %1738 = vmatprep.mubr.f32.mxu0 0.0
    %1739 = vmatmul.mubr.f32.gmra.mrb[0].mxu0 %v1657
    %v1740 = vpop.f32.mrb[0].mxu0
    %v1741 = vadd.f32 %v1646, %v1740
    %v1742 = vpop.f32.mrb[0].mxu0
    %1743 = vdwg.mxu0
    %v1744 = vmul.f32 %v1726, %v68
    %v1745 = vmul.f32 %v1731, %v69
    %v1746 = vmul.f32 %v1736, %v70
    %v1747 = vmul.f32 %v1741, %v71
    %v1748 = vadd.f32 %v1098, %v1744
    %v1749 = vadd.f32 %v1099, %v1745
    %v1750 = vadd.f32 %v1100, %v1746
    %v1751 = vadd.f32 %v1101, %v1747
    %v1752 = vld [vmem:[%s2 + $0xe8] sm:$0xff]
    %v1753 = vld [vmem:[%s2 + $0xf0] sm:$0xff]
    %v1754 = vld [vmem:[%s2 + $0xf8] sm:$0x1]
    %v1755 = vsel %vm512, %v1748, -inf
    %v1756 = vsel %vm512, %v1749, -inf
    %v1757 = vmax.f32 %v1755, %v1756
    %v1758 = vrot.slane %v1757, 4
    %v1759 = vmax.f32 %v1757, %v1758
    %v1760 = vrot.slane %v1759, 2
    %v1761 = vmax.f32 %v1759, %v1760
    %v1762 = vrot.slane %v1761, 1
    %v1763 = vmax.f32 %v1761, %v1762
    %v1764 = vsel %vm512, %v1750, -inf
    %v1765 = vsel %vm512, %v1751, -inf
    %v1766 = vmax.f32 %v1764, %v1765
    %v1767 = vrot.slane %v1766, 4
    %v1768 = vmax.f32 %v1766, %v1767
    %v1769 = vrot.slane %v1768, 2
    %v1770 = vmax.f32 %v1768, %v1769
    %v1771 = vrot.slane %v1770, 1
    %v1772 = vmax.f32 %v1770, %v1771
    %v1773 = vsel %vm88, %v1763, %v1772
    %v1774 = vlaneseq
    %v1775 = vshrl.u32 %v1774, 7
    %v1776 = vsub.s32 0, %v1775
    %v1777 = vrot.slane %v1754, %v1776
    %v1779 = vsel %vm512, %v1773, 0
    %1781 = vmatprep.subr.mxu0 0.0
    %1782 = vmatpush1.msra.mxu0 %v1752
    %1783 = vmatprep.subr.mxu0 0.0
    %1784 = vmatpush1.msra.mxu0 %v1753
    %1785 = vmatprep.subr.mxu0 0.0
    %1786 = vmatpush1.msra.mxu0 0.0
    %1787 = vmatprep.subr.mxu0 0.0
    %1788 = vmatpush1.msra.mxu0 0.0
    %1789 = vmatprep.subr.mxu0 0.0
    %1790 = vmatpush1.msra.mxu0 0.0
    %1791 = vmatprep.subr.mxu0 0.0
    %1792 = vmatpush1.msra.mxu0 0.0
    %1793 = vmatprep.subr.mxu0 0.0
    %1794 = vmatpush1.msra.mxu0 0.0
    %1795 = vmatprep.subr.mxu0 0.0
    %1796 = vmatpush1.msra.mxu0 0.0
    %1797 = vmatprep.subr.mxu0 0.0
    %1798 = vmatpush1.msra.mxu0 0.0
    %1799 = vmatprep.subr.mxu0 0.0
    %1800 = vmatpush1.msra.mxu0 0.0
    %1801 = vmatprep.subr.mxu0 0.0
    %1802 = vmatpush1.msra.mxu0 0.0
    %1803 = vmatprep.subr.mxu0 0.0
    %1804 = vmatpush1.msra.mxu0 0.0
    %1805 = vmatprep.subr.mxu0 0.0
    %1806 = vmatpush1.msra.mxu0 0.0
    %1807 = vmatprep.subr.mxu0 0.0
    %1808 = vmatpush1.msra.mxu0 0.0
    %1809 = vmatprep.subr.mxu0 0.0
    %1810 = vmatpush1.msra.mxu0 0.0
    %1811 = vmatprep.subr.mxu0 0.0
    %1812 = vmatpush1.msra.mxu0 0.0
    %1813 = vmatprep.subr.mxu0 0.0
    %1814 = vmatpush1.msra.mxu0 0.0
    %1815 = vmatprep.subr.mxu0 0.0
    %1816 = vmatpush1.msra.mxu0 0.0
    %1817 = vmatprep.subr.mxu0 0.0
    %1818 = vmatpush1.msra.mxu0 0.0
    %1819 = vmatprep.subr.mxu0 0.0
    %1820 = vmatpush1.msra.mxu0 0.0
    %1821 = vmatprep.subr.mxu0 0.0
    %1822 = vmatpush1.msra.mxu0 0.0
    %1823 = vmatprep.subr.mxu0 0.0
    %1824 = vmatpush1.msra.mxu0 0.0
    %1825 = vmatprep.subr.mxu0 0.0
    %1826 = vmatpush1.msra.mxu0 0.0
    %1827 = vmatprep.subr.mxu0 0.0
    %1828 = vmatpush1.msra.mxu0 0.0
    %1829 = vmatprep.subr.mxu0 0.0
    %1830 = vmatpush1.msra.mxu0 0.0
    %1831 = vmatprep.subr.mxu0 0.0
    %1832 = vmatpush1.msra.mxu0 0.0
    %1833 = vmatprep.subr.mxu0 0.0
    %1834 = vmatpush1.msra.mxu0 0.0
    %1835 = vmatprep.subr.mxu0 0.0
    %1836 = vmatpush1.msra.mxu0 0.0
    %1837 = vmatprep.subr.mxu0 0.0
    %1838 = vmatpush1.msra.mxu0 0.0
    %1839 = vmatprep.subr.mxu0 0.0
    %1840 = vmatpush1.msra.mxu0 0.0
    %1841 = vmatprep.subr.mxu0 0.0
    %1842 = vmatpush1.msra.mxu0 0.0
    %1843 = vmatprep.subr.mxu0 0.0
    %1844 = vmatpush1.msra.mxu0 0.0
    %1845 = vmatprep.mubr.f32.mxu0 0.0
    %1846 = vmatmul.mubr.f32.gmra.mrb[0].mxu0 %v1779
    %v1847 = vpop.f32.mrb[0].mxu0
    %v1848 = vadd.f32 %v1777, %v1847
    %v1849 = vpop.f32.mrb[0].mxu0
    %1850 = vdwg.mxu0
    %vm1851 = vcmask 41984
    %v1852 = vsel %vm1851, %v1848, -inf
    %1853 = vmax.xlane.f32.xlu0 %v1852
    %v1854 = vpop.xlane.xlu0 %1853
    %v1855 = vsub.f32 %v1848, %v1854
    %v1856 = vmul.f32 %v1855, 1.442695
    %v1857 = vpow.pop %v1856
    %v1858 = vsel %vm1851, %v1857, 0.0
    %1859 = vadd.xlane.f32.xlu0 %v1858
    %v1860 = vpop.xlane.xlu0 %1859
    %v1861 = vrcp.pop %v1860
    %v1862 = vmul.f32 1.0, %v1861
    %v1863 = vmul.f32 %v1857, %v1862
    %1864 = vst.msk [vmem:[#allocation2] sm:$0x3] %vm1851, %v1863
    // Predicated region
    $region14: #{protcnn_forward.1} parent=1 // pred_check
      _
    $region15: #{protcnn_forward.1} parent=1 // pred_check_branch
      %1866 = sbr.rel (0) target = $region17
    $region16: #{protcnn_forward.1} parent=1 // pred_region
      %s1868 = ssub.s32 32, 32
      %1869 = vsyncadd [#allocation3], %s1868
      %s1871 = sshll.u32 [#allocation2], 4
      %s1872 = int_to_ptr.vmem [resolvable:$true] %s1871
      %1874 = dma.vmem_to_hbm [thread:$0]  %s1872, 32, %s3, [#allocation3]
    $region17: #{protcnn_forward.1} parent=1 // pred_fallthru
      _
    // Predicated region
    $region18: #{protcnn_forward.1} parent=1 // pred_check
      _
    $region19: #{protcnn_forward.1} parent=1 // pred_check_branch
      %1876 = sbr.rel (0) target = $region21
    $region20: #{protcnn_forward.1} parent=1 // pred_region
      %1877 = dma.done [#allocation3], 32
    $region21: #{protcnn_forward.1} parent=1 // pred_fallthru
      _
    %1878 = vsyncpa [#allocation3], 1

</llo_original>
